<compile_context>
chip_gen: v6e
topology: v6e:2x2x1
jax: 0.10.0
libtpu: 0.0.40
codegen_flags: <defaults>
</compile_context>

<pallas_src>
import functools

import jax
import jax.numpy as jnp
from jax.experimental import pallas as pl
from jax.experimental.pallas import tpu as pltpu

EPS = 1e-5

# Operand dtype for activations / weights.  Set to jnp.bfloat16 on v6e/v7x to
# halve HBM/VMEM traffic; accumulation, BN math and stats stay f32 in-kernel
# (v5e-safe).  Kept at f32 here so the check against the f32 reference is tight.
OPERAND_DTYPE = jnp.float32


# ----------------------------------------------------------------------------
# Fused kernel: [optional input BN+ReLU] -> zero-pad -> 3x3x3 conv (one MXU
# dot, Toeplitz-over-W im2col) -> conv output + per-sample BN partial stats
# ----------------------------------------------------------------------------
def _conv_bn_kernel(x_ref, w_ref, scale_ref, shift_ref, o_ref, stats_ref,
                    xpad_ref, *, D, H, W, Cin, Cout, K_pad, fuse_bn_relu):
    # x_ref:     (1, D, H, W*Cin)      one sample, channels-last, (W, C) folded
    # w_ref:     (K_pad, W*Cout)       Toeplitz-over-W folded 3x3x3 weights
    # scale_ref: (Cin,) SMEM           BN scale applied to the *input* (conv2)
    # shift_ref: (Cin,) SMEM           BN shift applied to the *input*
    # o_ref:     (1, D*H, W*Cout)      conv output
    # stats_ref: (1, 2, W*Cout)        per-sample [sum, sum-sq] partials
    # xpad_ref:  VMEM (D+2, H+2, (W+2)*Cin) halo scratch
    f32 = jnp.float32
    WCin = W * Cin
    WpCin = (W + 2) * Cin
    cdtype = xpad_ref.dtype

    x = x_ref[0].astype(f32)                                  # (D, H, W*Cin)
    if fuse_bn_relu:
        # bn1 + ReLU fused into conv2's input path.  Per-channel scale/shift
        # broadcast across the folded (w, c) lane axis via iota + Cin selects
        # (scalars read from SMEM) -- no wrapper-side tiling / extra HBM array.
        lane_c = jax.lax.broadcasted_iota(jnp.int32, (1, WCin), 1) % Cin
        sc = jnp.zeros((1, WCin), f32)
        sh = jnp.zeros((1, WCin), f32)
        for c in range(Cin):
            sc = jnp.where(lane_c == c, scale_ref[c], sc)
            sh = jnp.where(lane_c == c, shift_ref[c], sh)
        x = jnp.maximum(x * sc + sh, 0.0)
    x = x.astype(cdtype)

    # Fused zero padding.  The interior slabs (H and W halos concatenated in
    # as zeros at value level) are fully rewritten every grid step, so only
    # the two D-halo slabs need zeroing (cheap, and no cross-iteration state
    # is ever read -> safe with a "parallel"/megacore-split grid axis).
    zc = jnp.zeros((D, H, Cin), cdtype)
    xw = jnp.concatenate([zc, x, zc], axis=2)                 # (D, H, WpCin)
    zr = jnp.zeros((D, 1, WpCin), cdtype)
    xhw = jnp.concatenate([zr, xw, zr], axis=1)               # (D, H+2, WpCin)
    zslab = jnp.zeros((H + 2, WpCin), cdtype)
    xpad_ref[0, :, :] = zslab
    xpad_ref[D + 1, :, :] = zslab
    xpad_ref[1:D + 1, :, :] = xhw

    # Toeplitz-over-W im2col: rows = (d, h), K = 9*(W+2)*Cin (+ zero pad to
    # K_pad).  The kw taps live inside the folded weight matrix, so each of
    # the 9 (kd, kh) segments is a full-lane-row slice of the halo scratch.
    segs = []
    for kd in range(3):
        for kh in range(3):
            segs.append(xpad_ref[kd:kd + D, kh:kh + H, :])    # (D, H, WpCin)
    if K_pad > 9 * WpCin:
        segs.append(jnp.zeros((D, H, K_pad - 9 * WpCin), cdtype))
    patch = jnp.concatenate(segs, axis=-1).reshape(D * H, K_pad)

    acc = jnp.dot(patch, w_ref[...],
                  preferred_element_type=f32)                 # (D*H, W*Cout)
    o_ref[0] = acc.astype(o_ref.dtype)

    # BN partial stats while acc is live -> no separate stats pass over HBM.
    s = jnp.sum(acc, axis=0, keepdims=True)                   # (1, W*Cout)
    ss = jnp.sum(acc * acc, axis=0, keepdims=True)            # (1, W*Cout)
    stats_ref[0] = jnp.concatenate([s, ss], axis=0)           # (2, W*Cout)


def conv3x3x3_bn_pallas(x_flat, w_big, *, W, Cin, scale=None, shift=None):
    """3x3x3 conv (stride 1, pad 1, no bias) with optional fused input BN+ReLU.

    x_flat: (N, D, H, W*Cin) channels-last activation with (W, C) folded.
    w_big:  (K_pad, W*Cout)  Toeplitz-folded weights (see fold_conv_weight).
    Returns (y (N, D*H, W*Cout), stats (N, 2, W*Cout)); y is the same
    contiguous NDHWC buffer as (N, D, H, W, Cout), so wrapper reshapes are free.
    """
    N, D, H, WCin = x_flat.shape
    assert WCin == W * Cin
    K_pad, WCout = w_big.shape
    Cout = WCout // W
    fuse = scale is not None
    if not fuse:
        scale = jnp.zeros((Cin,), jnp.float32)
        shift = jnp.zeros((Cin,), jnp.float32)

    kernel = functools.partial(_conv_bn_kernel, D=D, H=H, W=W, Cin=Cin,
                               Cout=Cout, K_pad=K_pad, fuse_bn_relu=fuse)
    itemsize = jnp.dtype(x_flat.dtype).itemsize
    cost = pl.CostEstimate(
        flops=2 * N * (D * H) * K_pad * WCout,
        transcendentals=0,
        bytes_accessed=(x_flat.size * itemsize + w_big.size * itemsize
                        + N * D * H * WCout * itemsize + N * 2 * WCout * 4))

    out, stats = pl.pallas_call(
        kernel,
        out_shape=(jax.ShapeDtypeStruct((N, D * H, WCout), x_flat.dtype),
                   jax.ShapeDtypeStruct((N, 2, WCout), jnp.float32)),
        grid=(N,),
        in_specs=[
            pl.BlockSpec((1, D, H, WCin), lambda n: (n, 0, 0, 0)),
            pl.BlockSpec((K_pad, WCout), lambda n: (0, 0)),
            pl.BlockSpec(memory_space=pltpu.MemorySpace.SMEM),
            pl.BlockSpec(memory_space=pltpu.MemorySpace.SMEM),
        ],
        out_specs=(
            pl.BlockSpec((1, D * H, WCout), lambda n: (n, 0, 0)),
            pl.BlockSpec((1, 2, WCout), lambda n: (n, 0, 0)),
        ),
        scratch_shapes=[
            pltpu.VMEM((D + 2, H + 2, (W + 2) * Cin), x_flat.dtype)],
        compiler_params=pltpu.CompilerParams(
            dimension_semantics=("parallel",),
            vmem_limit_bytes=32 * 1024 * 1024),
        cost_estimate=cost,
    )(x_flat, w_big, scale.astype(jnp.float32), shift.astype(jnp.float32))
    return out, stats


# ----------------------------------------------------------------------------
# Lane-dense tail: bn2 (scale/shift) + residual add + ReLU on (N, D, H*W*C)
# ----------------------------------------------------------------------------
def _bn_add_relu_kernel(y_ref, r_ref, scale_ref, shift_ref, o_ref, *, C, HWC):
    f32 = jnp.float32
    lane_c = jax.lax.broadcasted_iota(jnp.int32, (1, HWC), 1) % C
    sc = jnp.zeros((1, HWC), f32)
    sh = jnp.zeros((1, HWC), f32)
    for c in range(C):
        sc = jnp.where(lane_c == c, scale_ref[c], sc)
        sh = jnp.where(lane_c == c, shift_ref[c], sh)
    y = y_ref[0].astype(f32)                                  # (D, HWC)
    r = r_ref[0].astype(f32)
    o_ref[0] = jnp.maximum(y * sc + sh + r, 0.0)


def bn_add_relu_pallas(y_flat, res_flat, scale, shift, *, C):
    # y_flat, res_flat: (N, D, H*W*C) -- last dim a large multiple of 128 so
    # every load / store is a full-lane vector op.
    N, D, HWC = y_flat.shape
    kernel = functools.partial(_bn_add_relu_kernel, C=C, HWC=HWC)
    return pl.pallas_call(
        kernel,
        out_shape=jax.ShapeDtypeStruct((N, D, HWC), jnp.float32),
        grid=(N,),
        in_specs=[
            pl.BlockSpec((1, D, HWC), lambda n: (n, 0, 0)),
            pl.BlockSpec((1, D, HWC), lambda n: (n, 0, 0)),
            pl.BlockSpec(memory_space=pltpu.MemorySpace.SMEM),
            pl.BlockSpec(memory_space=pltpu.MemorySpace.SMEM),
        ],
        out_specs=pl.BlockSpec((1, D, HWC), lambda n: (n, 0, 0)),
        compiler_params=pltpu.CompilerParams(
            dimension_semantics=("parallel",)),
    )(y_flat, res_flat, scale.astype(jnp.float32), shift.astype(jnp.float32))


# ----------------------------------------------------------------------------
# Weight folding + BN parameter helpers
# ----------------------------------------------------------------------------
def fold_conv_weight(w, W):
    """Fold (Cout, Cin, 3, 3, 3) weights into a Toeplitz-over-W im2col matrix
    (K_pad, W*Cout): K index = (kd*3+kh, w_pad, ci), padded to a 128 multiple;
    column index = (w_out, co)."""
    Cout, Cin, KD, KH, KW = w.shape
    Wp = W + 2
    wt = jnp.transpose(w.astype(jnp.float32), (2, 3, 4, 1, 0))  # (kd,kh,kw,ci,co)
    wt = wt.reshape(KD * KH, KW, Cin, Cout)
    big = jnp.zeros((KD * KH, Wp, Cin, W, Cout), jnp.float32)
    for kw in range(KW):
        for wo in range(W):
            big = big.at[:, wo + kw, :, wo, :].set(wt[:, kw])
    K = KD * KH * Wp * Cin
    K_pad = ((K + 127) // 128) * 128
    big = jnp.pad(big.reshape(K, W * Cout), ((0, K_pad - K), (0, 0)))
    return big.astype(OPERAND_DTYPE)


def _bn_params(stats, count, gamma, beta, W):
    # stats: (N, 2, W*Cout) per-sample [sum, sum-sq] partials over (d, h).
    n = stats.shape[0]
    Cout = stats.shape[-1] // W
    sums = jnp.sum(stats.reshape(n, 2, W, Cout), axis=(0, 2))   # (2, Cout)
    mean = sums[0] / count
    var = jnp.maximum(sums[1] / count - mean * mean, 0.0)       # clamp cancel
    scale = gamma.astype(jnp.float32) / jnp.sqrt(var + EPS)
    shift = beta.astype(jnp.float32) - mean * scale
    return scale, shift


# ----------------------------------------------------------------------------
# BasicBlock3D forward (stride=1, downsample=None)
# ----------------------------------------------------------------------------
def basic_block_3d_forward(x_ncdhw, w1, w2, g1, b1, g2, b2):
    # x_ncdhw: (N, C, D, H, W) like PyTorch; weights (Cout, Cin, 3, 3, 3).
    x = jnp.transpose(x_ncdhw, (0, 2, 3, 4, 1)).astype(jnp.float32)   # NDHWC
    N, D, H, W, C = x.shape
    count = float(N * D * H * W)

    w1m = fold_conv_weight(w1, W)                     # (K_pad, W*C)
    w2m = fold_conv_weight(w2, W)

    x_op = x.astype(OPERAND_DTYPE)
    x_flat = x_op.reshape(N, D, H, W * C)             # free, contiguous NDHWC

    # conv1 (+ fused per-sample batch stats for bn1)
    y1, stats1 = conv3x3x3_bn_pallas(x_flat, w1m, W=W, Cin=C)
    scale1, shift1 = _bn_params(stats1, count, g1, b1, W)

    # bn1 + ReLU fused into conv2's input path; conv2 also emits bn2 stats.
    y1_in = y1.reshape(N, D, H, W * C)                # free reshape
    y2, stats2 = conv3x3x3_bn_pallas(y1_in, w2m, W=W, Cin=C,
                                     scale=scale1, shift=shift1)
    scale2, shift2 = _bn_params(stats2, count, g2, b2, W)

    # bn2 + residual add + ReLU (lane-dense tail)
    out = bn_add_relu_pallas(y2.reshape(N, D, H * W * C),
                             x_op.reshape(N, D, H * W * C),
                             scale2, shift2, C=C)
    out = out.reshape(N, D, H, W, C)
    return jnp.transpose(out, (0, 4, 1, 2, 3))        # NCDHW


# ----------------------------------------------------------------------------
# Pure-JAX reference (mirrors the PyTorch module, training-mode BN)
# ----------------------------------------------------------------------------
def reference_forward(x, w1, w2, g1, b1, g2, b2):
    def conv(x, w):
        return jax.lax.conv_general_dilated(
            x, w, window_strides=(1, 1, 1),
            padding=((1, 1), (1, 1), (1, 1)),
            dimension_numbers=("NCDHW", "OIDHW", "NCDHW"))

    def bn(x, g, b):
        mean = jnp.mean(x, axis=(0, 2, 3, 4), keepdims=True)
        var = jnp.mean((x - mean) ** 2, axis=(0, 2, 3, 4), keepdims=True)
        return ((x - mean) / jnp.sqrt(var + EPS)) * g.reshape(1, -1, 1, 1, 1) \
               + b.reshape(1, -1, 1, 1, 1)

    out = jax.nn.relu(bn(conv(x, w1), g1, b1))
    out = bn(conv(out, w2), g2, b2) + x
    return jax.nn.relu(out)


if __name__ == "__main__":
    # Small shapes: in_planes = planes = 4, stride = 1, downsample = None.
    N, C, D, H, W = 2, 4, 4, 8, 8
    planes = C

    key = jax.random.PRNGKey(0)
    kx, kw1, kw2, kg1, kb1, kg2, kb2 = jax.random.split(key, 7)

    x = jax.random.normal(kx, (N, C, D, H, W), jnp.float32)
    w1 = 0.1 * jax.random.normal(kw1, (planes, C, 3, 3, 3), jnp.float32)
    w2 = 0.1 * jax.random.normal(kw2, (planes, planes, 3, 3, 3), jnp.float32)
    g1 = 1.0 + 0.1 * jax.random.normal(kg1, (planes,), jnp.float32)
    b1 = 0.1 * jax.random.normal(kb1, (planes,), jnp.float32)
    g2 = 1.0 + 0.1 * jax.random.normal(kg2, (planes,), jnp.float32)
    b2 = 0.1 * jax.random.normal(kb2, (planes,), jnp.float32)

    out = jax.jit(basic_block_3d_forward)(x, w1, w2, g1, b1, g2, b2)
    out = jax.block_until_ready(out)

    ref = reference_forward(x, w1, w2, g1, b1, g2, b2)
    assert out.shape == ref.shape == (N, C, D, H, W)
    max_err = float(jnp.max(jnp.abs(out - ref)))
    assert max_err < 1e-2, f"max abs error {max_err}"

    print("KERNEL_OK")
</pallas_src>

<mosaic_0001>
module attributes {stable_mosaic.version = 11 : i64} {
  func.func @_conv_bn_kernel(%arg0: i32, %arg1: memref<1x4x8x32xf32, #tpu.memory_space<vmem>>, %arg2: memref<384x32xf32, #tpu.memory_space<vmem>>, %arg3: memref<4xf32, #tpu.memory_space<smem>>, %arg4: memref<4xf32, #tpu.memory_space<smem>>, %arg5: memref<1x32x32xf32, #tpu.memory_space<vmem>>, %arg6: memref<1x2x32xf32, #tpu.memory_space<vmem>>, %arg7: memref<6x10x40xf32, #tpu.memory_space<vmem>>) attributes {dimension_semantics = [#tpu.dimension_semantics<parallel>], iteration_bounds = array<i64: 2>, scalar_prefetch = 0 : i64, scratch_operands = 1 : i64, tpu.core_type = #tpu.core_type<tc>, window_params = [{transform_indices = @transform_0, window_bounds = array<i64: 1, 4, 8, 32>}, {pipeline_mode = #tpu.pipeline_mode<synchronous>, transform_indices = @transform_1, window_bounds = array<i64: 384, 32>}, {transform_indices = @transform_2, window_bounds = array<i64: 4>}, {transform_indices = @transform_3, window_bounds = array<i64: 4>}, {transform_indices = @transform_4, window_bounds = array<i64: 1, 32, 32>}, {transform_indices = @transform_5, window_bounds = array<i64: 1, 2, 32>}]} {
    %c0 = arith.constant 0 : index
    %c0_0 = arith.constant 0 : index
    %c0_1 = arith.constant 0 : index
    %c0_2 = arith.constant 0 : index
    %0 = vector.load %arg1[%c0, %c0_0, %c0_1, %c0_2] : memref<1x4x8x32xf32, #tpu.memory_space<vmem>>, vector<1x4x8x32xf32>
    %1 = vector.shape_cast %0 : vector<1x4x8x32xf32> to vector<4x8x32xf32>
    %cst = arith.constant 0.000000e+00 : f32
    %2 = vector.broadcast %cst : f32 to vector<4x8x4xf32>
    %3 = tpu.concatenate %2, %1, %2 in 2 : vector<4x8x4xf32>, vector<4x8x32xf32>, vector<4x8x4xf32> -> vector<4x8x40xf32>
    %cst_3 = arith.constant 0.000000e+00 : f32
    %4 = vector.broadcast %cst_3 : f32 to vector<4x1x40xf32>
    %5 = tpu.concatenate %4, %3, %4 in 1 : vector<4x1x40xf32>, vector<4x8x40xf32>, vector<4x1x40xf32> -> vector<4x10x40xf32>
    %cst_4 = arith.constant 0.000000e+00 : f32
    %6 = vector.broadcast %cst_4 : f32 to vector<10x40xf32>
    %c0_5 = arith.constant 0 : index
    %c0_6 = arith.constant 0 : index
    %c0_7 = arith.constant 0 : index
    %7 = vector.load %arg7[%c0_5, %c0_6, %c0_7] : memref<6x10x40xf32, #tpu.memory_space<vmem>>, vector<1x10x40xf32>
    %8 = vector.shape_cast %7 : vector<1x10x40xf32> to vector<10x40xf32>
    %9 = vector.shape_cast %6 : vector<10x40xf32> to vector<1x10x40xf32>
    tpu.vector_store %arg7[%c0_5, %c0_6, %c0_7], %9 {strides = array<i32>} : memref<6x10x40xf32, #tpu.memory_space<vmem>>, vector<1x10x40xf32>,
    %c5 = arith.constant 5 : index
    %c0_8 = arith.constant 0 : index
    %c0_9 = arith.constant 0 : index
    %10 = vector.load %arg7[%c5, %c0_8, %c0_9] : memref<6x10x40xf32, #tpu.memory_space<vmem>>, vector<1x10x40xf32>
    %11 = vector.shape_cast %10 : vector<1x10x40xf32> to vector<10x40xf32>
    %12 = vector.shape_cast %6 : vector<10x40xf32> to vector<1x10x40xf32>
    tpu.vector_store %arg7[%c5, %c0_8, %c0_9], %12 {strides = array<i32>} : memref<6x10x40xf32, #tpu.memory_space<vmem>>, vector<1x10x40xf32>,
    %c1 = arith.constant 1 : index
    %c0_10 = arith.constant 0 : index
    %c0_11 = arith.constant 0 : index
    %13 = vector.load %arg7[%c1, %c0_10, %c0_11] : memref<6x10x40xf32, #tpu.memory_space<vmem>>, vector<4x10x40xf32>
    tpu.vector_store %arg7[%c1, %c0_10, %c0_11], %5 {strides = array<i32>} : memref<6x10x40xf32, #tpu.memory_space<vmem>>, vector<4x10x40xf32>,
    %c0_12 = arith.constant 0 : index
    %c0_13 = arith.constant 0 : index
    %c0_14 = arith.constant 0 : index
    %14 = vector.load %arg7[%c0_12, %c0_13, %c0_14] : memref<6x10x40xf32, #tpu.memory_space<vmem>>, vector<4x8x40xf32>
    %c0_15 = arith.constant 0 : index
    %c1_16 = arith.constant 1 : index
    %c0_17 = arith.constant 0 : index
    %15 = vector.load %arg7[%c0_15, %c1_16, %c0_17] : memref<6x10x40xf32, #tpu.memory_space<vmem>>, vector<4x8x40xf32>
    %c0_18 = arith.constant 0 : index
    %c2 = arith.constant 2 : index
    %c0_19 = arith.constant 0 : index
    %16 = vector.load %arg7[%c0_18, %c2, %c0_19] : memref<6x10x40xf32, #tpu.memory_space<vmem>>, vector<4x8x40xf32>
    %c1_20 = arith.constant 1 : index
    %c0_21 = arith.constant 0 : index
    %c0_22 = arith.constant 0 : index
    %17 = vector.load %arg7[%c1_20, %c0_21, %c0_22] : memref<6x10x40xf32, #tpu.memory_space<vmem>>, vector<4x8x40xf32>
    %c1_23 = arith.constant 1 : index
    %c1_24 = arith.constant 1 : index
    %c0_25 = arith.constant 0 : index
    %18 = vector.load %arg7[%c1_23, %c1_24, %c0_25] : memref<6x10x40xf32, #tpu.memory_space<vmem>>, vector<4x8x40xf32>
    %c1_26 = arith.constant 1 : index
    %c2_27 = arith.constant 2 : index
    %c0_28 = arith.constant 0 : index
    %19 = vector.load %arg7[%c1_26, %c2_27, %c0_28] : memref<6x10x40xf32, #tpu.memory_space<vmem>>, vector<4x8x40xf32>
    %c2_29 = arith.constant 2 : index
    %c0_30 = arith.constant 0 : index
    %c0_31 = arith.constant 0 : index
    %20 = vector.load %arg7[%c2_29, %c0_30, %c0_31] : memref<6x10x40xf32, #tpu.memory_space<vmem>>, vector<4x8x40xf32>
    %c2_32 = arith.constant 2 : index
    %c1_33 = arith.constant 1 : index
    %c0_34 = arith.constant 0 : index
    %21 = vector.load %arg7[%c2_32, %c1_33, %c0_34] : memref<6x10x40xf32, #tpu.memory_space<vmem>>, vector<4x8x40xf32>
    %c2_35 = arith.constant 2 : index
    %c2_36 = arith.constant 2 : index
    %c0_37 = arith.constant 0 : index
    %22 = vector.load %arg7[%c2_35, %c2_36, %c0_37] : memref<6x10x40xf32, #tpu.memory_space<vmem>>, vector<4x8x40xf32>
    %cst_38 = arith.constant 0.000000e+00 : f32
    %23 = vector.broadcast %cst_38 : f32 to vector<4x8x24xf32>
    %24 = tpu.concatenate %14, %15, %16, %17, %18, %19, %20, %21, %22, %23 in 2 : vector<4x8x40xf32>, vector<4x8x40xf32>, vector<4x8x40xf32>, vector<4x8x40xf32>, vector<4x8x40xf32>, vector<4x8x40xf32>, vector<4x8x40xf32>, vector<4x8x40xf32>, vector<4x8x40xf32>, vector<4x8x24xf32> -> vector<4x8x384xf32>
    %25 = vector.shape_cast %24 : vector<4x8x384xf32> to vector<32x384xf32>
    %c0_39 = arith.constant 0 : index
    %c0_40 = arith.constant 0 : index
    %26 = vector.load %arg2[%c0_39, %c0_40] : memref<384x32xf32, #tpu.memory_space<vmem>>, vector<384x32xf32>
    %cst_41 = arith.constant dense<0.000000e+00> : vector<32x32xf32>
    %27 = tpu.matmul %25, %26, %cst_41 {dimension_numbers = #tpu.dot_dimension_numbers<[1], [0], [0], [1], [0, 0, 1, 1], [], []>} : vector<32x384xf32>, vector<384x32xf32>, vector<32x32xf32> -> vector<32x32xf32>
    %c0_42 = arith.constant 0 : index
    %c0_43 = arith.constant 0 : index
    %c0_44 = arith.constant 0 : index
    %28 = vector.load %arg5[%c0_42, %c0_43, %c0_44] : memref<1x32x32xf32, #tpu.memory_space<vmem>>, vector<1x32x32xf32>
    %29 = vector.shape_cast %28 : vector<1x32x32xf32> to vector<32x32xf32>
    %30 = vector.shape_cast %27 : vector<32x32xf32> to vector<1x32x32xf32>
    tpu.vector_store %arg5[%c0_42, %c0_43, %c0_44], %30 {strides = array<i32>} : memref<1x32x32xf32, #tpu.memory_space<vmem>>, vector<1x32x32xf32>,
    %cst_45 = arith.constant dense<0.000000e+00> : vector<32xf32>
    %31 = vector.multi_reduction <add>, %27, %cst_45 [0] : vector<32x32xf32> to vector<32xf32>
    %32 = vector.shape_cast %31 : vector<32xf32> to vector<1x32xf32>
    %33 = arith.mulf %27, %27 : vector<32x32xf32>
    %cst_46 = arith.constant dense<0.000000e+00> : vector<32xf32>
    %34 = vector.multi_reduction <add>, %33, %cst_46 [0] : vector<32x32xf32> to vector<32xf32>
    %35 = vector.shape_cast %34 : vector<32xf32> to vector<1x32xf32>
    %36 = tpu.concatenate %32, %35 in 0 : vector<1x32xf32>, vector<1x32xf32> -> vector<2x32xf32>
    %c0_47 = arith.constant 0 : index
    %c0_48 = arith.constant 0 : index
    %c0_49 = arith.constant 0 : index
    %37 = vector.load %arg6[%c0_47, %c0_48, %c0_49] : memref<1x2x32xf32, #tpu.memory_space<vmem>>, vector<1x2x32xf32>
    %38 = vector.shape_cast %37 : vector<1x2x32xf32> to vector<2x32xf32>
    %39 = vector.shape_cast %36 : vector<2x32xf32> to vector<1x2x32xf32>
    tpu.vector_store %arg6[%c0_47, %c0_48, %c0_49], %39 {strides = array<i32>} : memref<1x2x32xf32, #tpu.memory_space<vmem>>, vector<1x2x32xf32>,
    return
  }
  func.func @transform_0(%arg0: i32) -> (i32, i32, i32, i32) {
    %c0_i32 = arith.constant 0 : i32
    %c0_i32_0 = arith.constant 0 : i32
    %c0_i32_1 = arith.constant 0 : i32
    %c0_i32_2 = arith.constant 0 : i32
    return %arg0, %c0_i32, %c0_i32_0, %c0_i32_1 : i32, i32, i32, i32
  }
  func.func @transform_1(%arg0: i32) -> (i32, i32) {
    %c0_i32 = arith.constant 0 : i32
    %c0_i32_0 = arith.constant 0 : i32
    %c0_i32_1 = arith.constant 0 : i32
    return %c0_i32, %c0_i32_0 : i32, i32
  }
  func.func @transform_2(%arg0: i32) -> i32 {
    %c0_i32 = arith.constant 0 : i32
    %c0_i32_0 = arith.constant 0 : i32
    return %c0_i32 : i32
  }
  func.func @transform_3(%arg0: i32) -> i32 {
    %c0_i32 = arith.constant 0 : i32
    %c0_i32_0 = arith.constant 0 : i32
    return %c0_i32 : i32
  }
  func.func @transform_4(%arg0: i32) -> (i32, i32, i32) {
    %c0_i32 = arith.constant 0 : i32
    %c0_i32_0 = arith.constant 0 : i32
    %c0_i32_1 = arith.constant 0 : i32
    return %arg0, %c0_i32, %c0_i32_0 : i32, i32, i32
  }
  func.func @transform_5(%arg0: i32) -> (i32, i32, i32) {
    %c0_i32 = arith.constant 0 : i32
    %c0_i32_0 = arith.constant 0 : i32
    %c0_i32_1 = arith.constant 0 : i32
    return %arg0, %c0_i32, %c0_i32_0 : i32, i32, i32
  }
}

module attributes {stable_mosaic.version = 11 : i64} {
  func.func @_conv_bn_kernel(%arg0: i32, %arg1: memref<1x4x8x32xf32, #tpu.memory_space<vmem>>, %arg2: memref<384x32xf32, #tpu.memory_space<vmem>>, %arg3: memref<4xf32, #tpu.memory_space<smem>>, %arg4: memref<4xf32, #tpu.memory_space<smem>>, %arg5: memref<1x32x32xf32, #tpu.memory_space<vmem>>, %arg6: memref<1x2x32xf32, #tpu.memory_space<vmem>>, %arg7: memref<6x10x40xf32, #tpu.memory_space<vmem>>) attributes {dimension_semantics = [#tpu.dimension_semantics<parallel>], iteration_bounds = array<i64: 2>, scalar_prefetch = 0 : i64, scratch_operands = 1 : i64, tpu.core_type = #tpu.core_type<tc>, window_params = [{transform_indices = @transform_0, window_bounds = array<i64: 1, 4, 8, 32>}, {pipeline_mode = #tpu.pipeline_mode<synchronous>, transform_indices = @transform_1, window_bounds = array<i64: 384, 32>}, {transform_indices = @transform_2, window_bounds = array<i64: 4>}, {transform_indices = @transform_3, window_bounds = array<i64: 4>}, {transform_indices = @transform_4, window_bounds = array<i64: 1, 32, 32>}, {transform_indices = @transform_5, window_bounds = array<i64: 1, 2, 32>}]} {
    %c0 = arith.constant 0 : index
    %c0_0 = arith.constant 0 : index
    %c0_1 = arith.constant 0 : index
    %c0_2 = arith.constant 0 : index
    %0 = vector.load %arg1[%c0, %c0_0, %c0_1, %c0_2] : memref<1x4x8x32xf32, #tpu.memory_space<vmem>>, vector<1x4x8x32xf32>
    %1 = vector.shape_cast %0 : vector<1x4x8x32xf32> to vector<4x8x32xf32>
    %2 = tpu.iota {dimensions = array<i32: 1>} : vector<1x32xi32>
    %c4_i32 = arith.constant 4 : i32
    %c0_i32 = arith.constant 0 : i32
    %3 = arith.cmpi eq, %c4_i32, %c0_i32 : i32
    %c1_i32 = arith.constant 1 : i32
    %4 = arith.select %3, %c1_i32, %c4_i32 : i32
    %5 = vector.broadcast %4 : i32 to vector<1x32xi32>
    %6 = arith.remsi %2, %5 : vector<1x32xi32>
    %c0_i32_3 = arith.constant 0 : i32
    %7 = vector.broadcast %c0_i32_3 : i32 to vector<1x32xi32>
    %8 = arith.cmpi ne, %6, %7 : vector<1x32xi32>
    %c0_i32_4 = arith.constant 0 : i32
    %9 = vector.broadcast %c0_i32_4 : i32 to vector<1x32xi32>
    %10 = arith.cmpi slt, %6, %9 : vector<1x32xi32>
    %c0_i32_5 = arith.constant 0 : i32
    %11 = arith.cmpi slt, %4, %c0_i32_5 : i32
    %12 = vector.broadcast %11 : i1 to vector<1x32xi1>
    %13 = vector.broadcast %12 : vector<1x32xi1> to vector<1x32xi1>
    %14 = arith.xori %10, %13 : vector<1x32xi1>
    %15 = arith.andi %14, %8 : vector<1x32xi1>
    %16 = vector.broadcast %4 : i32 to vector<1x32xi32>
    %17 = arith.addi %6, %16 : vector<1x32xi32>
    %18 = arith.select %15, %17, %6 : vector<1x32xi1>, vector<1x32xi32>
    %cst = arith.constant 0.000000e+00 : f32
    %19 = vector.broadcast %cst : f32 to vector<1x32xf32>
    %cst_6 = arith.constant 0.000000e+00 : f32
    %20 = vector.broadcast %cst_6 : f32 to vector<1x32xf32>
    %c0_i32_7 = arith.constant 0 : i32
    %21 = vector.broadcast %c0_i32_7 : i32 to vector<1x32xi32>
    %22 = arith.cmpi eq, %18, %21 : vector<1x32xi32>
    %c0_8 = arith.constant 0 : index
    %23 = memref.load %arg3[%c0_8] : memref<4xf32, #tpu.memory_space<smem>>
    %24 = vector.broadcast %23 : f32 to vector<1x32xf32>
    %25 = arith.select %22, %24, %19 : vector<1x32xi1>, vector<1x32xf32>
    %c0_i32_9 = arith.constant 0 : i32
    %26 = vector.broadcast %c0_i32_9 : i32 to vector<1x32xi32>
    %27 = arith.cmpi eq, %18, %26 : vector<1x32xi32>
    %c0_10 = arith.constant 0 : index
    %28 = memref.load %arg4[%c0_10] : memref<4xf32, #tpu.memory_space<smem>>
    %29 = vector.broadcast %28 : f32 to vector<1x32xf32>
    %30 = arith.select %27, %29, %20 : vector<1x32xi1>, vector<1x32xf32>
    %c1_i32_11 = arith.constant 1 : i32
    %31 = vector.broadcast %c1_i32_11 : i32 to vector<1x32xi32>
    %32 = arith.cmpi eq, %18, %31 : vector<1x32xi32>
    %c1 = arith.constant 1 : index
    %33 = memref.load %arg3[%c1] : memref<4xf32, #tpu.memory_space<smem>>
    %34 = vector.broadcast %33 : f32 to vector<1x32xf32>
    %35 = arith.select %32, %34, %25 : vector<1x32xi1>, vector<1x32xf32>
    %c1_i32_12 = arith.constant 1 : i32
    %36 = vector.broadcast %c1_i32_12 : i32 to vector<1x32xi32>
    %37 = arith.cmpi eq, %18, %36 : vector<1x32xi32>
    %c1_13 = arith.constant 1 : index
    %38 = memref.load %arg4[%c1_13] : memref<4xf32, #tpu.memory_space<smem>>
    %39 = vector.broadcast %38 : f32 to vector<1x32xf32>
    %40 = arith.select %37, %39, %30 : vector<1x32xi1>, vector<1x32xf32>
    %c2_i32 = arith.constant 2 : i32
    %41 = vector.broadcast %c2_i32 : i32 to vector<1x32xi32>
    %42 = arith.cmpi eq, %18, %41 : vector<1x32xi32>
    %c2 = arith.constant 2 : index
    %43 = memref.load %arg3[%c2] : memref<4xf32, #tpu.memory_space<smem>>
    %44 = vector.broadcast %43 : f32 to vector<1x32xf32>
    %45 = arith.select %42, %44, %35 : vector<1x32xi1>, vector<1x32xf32>
    %c2_i32_14 = arith.constant 2 : i32
    %46 = vector.broadcast %c2_i32_14 : i32 to vector<1x32xi32>
    %47 = arith.cmpi eq, %18, %46 : vector<1x32xi32>
    %c2_15 = arith.constant 2 : index
    %48 = memref.load %arg4[%c2_15] : memref<4xf32, #tpu.memory_space<smem>>
    %49 = vector.broadcast %48 : f32 to vector<1x32xf32>
    %50 = arith.select %47, %49, %40 : vector<1x32xi1>, vector<1x32xf32>
    %c3_i32 = arith.constant 3 : i32
    %51 = vector.broadcast %c3_i32 : i32 to vector<1x32xi32>
    %52 = arith.cmpi eq, %18, %51 : vector<1x32xi32>
    %c3 = arith.constant 3 : index
    %53 = memref.load %arg3[%c3] : memref<4xf32, #tpu.memory_space<smem>>
    %54 = vector.broadcast %53 : f32 to vector<1x32xf32>
    %55 = arith.select %52, %54, %45 : vector<1x32xi1>, vector<1x32xf32>
    %c3_i32_16 = arith.constant 3 : i32
    %56 = vector.broadcast %c3_i32_16 : i32 to vector<1x32xi32>
    %57 = arith.cmpi eq, %18, %56 : vector<1x32xi32>
    %c3_17 = arith.constant 3 : index
    %58 = memref.load %arg4[%c3_17] : memref<4xf32, #tpu.memory_space<smem>>
    %59 = vector.broadcast %58 : f32 to vector<1x32xf32>
    %60 = arith.select %57, %59, %50 : vector<1x32xi1>, vector<1x32xf32>
    %61 = vector.shape_cast %55 : vector<1x32xf32> to vector<1x1x32xf32>
    %62 = vector.broadcast %61 : vector<1x1x32xf32> to vector<4x8x32xf32>
    %63 = arith.mulf %1, %62 : vector<4x8x32xf32>
    %64 = vector.shape_cast %60 : vector<1x32xf32> to vector<1x1x32xf32>
    %65 = vector.broadcast %64 : vector<1x1x32xf32> to vector<4x8x32xf32>
    %66 = arith.addf %63, %65 : vector<4x8x32xf32>
    %cst_18 = arith.constant 0.000000e+00 : f32
    %67 = vector.broadcast %cst_18 : f32 to vector<4x8x32xf32>
    %68 = arith.maximumf %66, %67 : vector<4x8x32xf32>
    %cst_19 = arith.constant 0.000000e+00 : f32
    %69 = vector.broadcast %cst_19 : f32 to vector<4x8x4xf32>
    %70 = tpu.concatenate %69, %68, %69 in 2 : vector<4x8x4xf32>, vector<4x8x32xf32>, vector<4x8x4xf32> -> vector<4x8x40xf32>
    %cst_20 = arith.constant 0.000000e+00 : f32
    %71 = vector.broadcast %cst_20 : f32 to vector<4x1x40xf32>
    %72 = tpu.concatenate %71, %70, %71 in 1 : vector<4x1x40xf32>, vector<4x8x40xf32>, vector<4x1x40xf32> -> vector<4x10x40xf32>
    %cst_21 = arith.constant 0.000000e+00 : f32
    %73 = vector.broadcast %cst_21 : f32 to vector<10x40xf32>
    %c0_22 = arith.constant 0 : index
    %c0_23 = arith.constant 0 : index
    %c0_24 = arith.constant 0 : index
    %74 = vector.load %arg7[%c0_22, %c0_23, %c0_24] : memref<6x10x40xf32, #tpu.memory_space<vmem>>, vector<1x10x40xf32>
    %75 = vector.shape_cast %74 : vector<1x10x40xf32> to vector<10x40xf32>
    %76 = vector.shape_cast %73 : vector<10x40xf32> to vector<1x10x40xf32>
    tpu.vector_store %arg7[%c0_22, %c0_23, %c0_24], %76 {strides = array<i32>} : memref<6x10x40xf32, #tpu.memory_space<vmem>>, vector<1x10x40xf32>,
    %c5 = arith.constant 5 : index
    %c0_25 = arith.constant 0 : index
    %c0_26 = arith.constant 0 : index
    %77 = vector.load %arg7[%c5, %c0_25, %c0_26] : memref<6x10x40xf32, #tpu.memory_space<vmem>>, vector<1x10x40xf32>
    %78 = vector.shape_cast %77 : vector<1x10x40xf32> to vector<10x40xf32>
    %79 = vector.shape_cast %73 : vector<10x40xf32> to vector<1x10x40xf32>
    tpu.vector_store %arg7[%c5, %c0_25, %c0_26], %79 {strides = array<i32>} : memref<6x10x40xf32, #tpu.memory_space<vmem>>, vector<1x10x40xf32>,
    %c1_27 = arith.constant 1 : index
    %c0_28 = arith.constant 0 : index
    %c0_29 = arith.constant 0 : index
    %80 = vector.load %arg7[%c1_27, %c0_28, %c0_29] : memref<6x10x40xf32, #tpu.memory_space<vmem>>, vector<4x10x40xf32>
    tpu.vector_store %arg7[%c1_27, %c0_28, %c0_29], %72 {strides = array<i32>} : memref<6x10x40xf32, #tpu.memory_space<vmem>>, vector<4x10x40xf32>,
    %c0_30 = arith.constant 0 : index
    %c0_31 = arith.constant 0 : index
    %c0_32 = arith.constant 0 : index
    %81 = vector.load %arg7[%c0_30, %c0_31, %c0_32] : memref<6x10x40xf32, #tpu.memory_space<vmem>>, vector<4x8x40xf32>
    %c0_33 = arith.constant 0 : index
    %c1_34 = arith.constant 1 : index
    %c0_35 = arith.constant 0 : index
    %82 = vector.load %arg7[%c0_33, %c1_34, %c0_35] : memref<6x10x40xf32, #tpu.memory_space<vmem>>, vector<4x8x40xf32>
    %c0_36 = arith.constant 0 : index
    %c2_37 = arith.constant 2 : index
    %c0_38 = arith.constant 0 : index
    %83 = vector.load %arg7[%c0_36, %c2_37, %c0_38] : memref<6x10x40xf32, #tpu.memory_space<vmem>>, vector<4x8x40xf32>
    %c1_39 = arith.constant 1 : index
    %c0_40 = arith.constant 0 : index
    %c0_41 = arith.constant 0 : index
    %84 = vector.load %arg7[%c1_39, %c0_40, %c0_41] : memref<6x10x40xf32, #tpu.memory_space<vmem>>, vector<4x8x40xf32>
    %c1_42 = arith.constant 1 : index
    %c1_43 = arith.constant 1 : index
    %c0_44 = arith.constant 0 : index
    %85 = vector.load %arg7[%c1_42, %c1_43, %c0_44] : memref<6x10x40xf32, #tpu.memory_space<vmem>>, vector<4x8x40xf32>
    %c1_45 = arith.constant 1 : index
    %c2_46 = arith.constant 2 : index
    %c0_47 = arith.constant 0 : index
    %86 = vector.load %arg7[%c1_45, %c2_46, %c0_47] : memref<6x10x40xf32, #tpu.memory_space<vmem>>, vector<4x8x40xf32>
    %c2_48 = arith.constant 2 : index
    %c0_49 = arith.constant 0 : index
    %c0_50 = arith.constant 0 : index
    %87 = vector.load %arg7[%c2_48, %c0_49, %c0_50] : memref<6x10x40xf32, #tpu.memory_space<vmem>>, vector<4x8x40xf32>
    %c2_51 = arith.constant 2 : index
    %c1_52 = arith.constant 1 : index
    %c0_53 = arith.constant 0 : index
    %88 = vector.load %arg7[%c2_51, %c1_52, %c0_53] : memref<6x10x40xf32, #tpu.memory_space<vmem>>, vector<4x8x40xf32>
    %c2_54 = arith.constant 2 : index
    %c2_55 = arith.constant 2 : index
    %c0_56 = arith.constant 0 : index
    %89 = vector.load %arg7[%c2_54, %c2_55, %c0_56] : memref<6x10x40xf32, #tpu.memory_space<vmem>>, vector<4x8x40xf32>
    %cst_57 = arith.constant 0.000000e+00 : f32
    %90 = vector.broadcast %cst_57 : f32 to vector<4x8x24xf32>
    %91 = tpu.concatenate %81, %82, %83, %84, %85, %86, %87, %88, %89, %90 in 2 : vector<4x8x40xf32>, vector<4x8x40xf32>, vector<4x8x40xf32>, vector<4x8x40xf32>, vector<4x8x40xf32>, vector<4x8x40xf32>, vector<4x8x40xf32>, vector<4x8x40xf32>, vector<4x8x40xf32>, vector<4x8x24xf32> -> vector<4x8x384xf32>
    %92 = vector.shape_cast %91 : vector<4x8x384xf32> to vector<32x384xf32>
    %c0_58 = arith.constant 0 : index
    %c0_59 = arith.constant 0 : index
    %93 = vector.load %arg2[%c0_58, %c0_59] : memref<384x32xf32, #tpu.memory_space<vmem>>, vector<384x32xf32>
    %cst_60 = arith.constant dense<0.000000e+00> : vector<32x32xf32>
    %94 = tpu.matmul %92, %93, %cst_60 {dimension_numbers = #tpu.dot_dimension_numbers<[1], [0], [0], [1], [0, 0, 1, 1], [], []>} : vector<32x384xf32>, vector<384x32xf32>, vector<32x32xf32> -> vector<32x32xf32>
    %c0_61 = arith.constant 0 : index
    %c0_62 = arith.constant 0 : index
    %c0_63 = arith.constant 0 : index
    %95 = vector.load %arg5[%c0_61, %c0_62, %c0_63] : memref<1x32x32xf32, #tpu.memory_space<vmem>>, vector<1x32x32xf32>
    %96 = vector.shape_cast %95 : vector<1x32x32xf32> to vector<32x32xf32>
    %97 = vector.shape_cast %94 : vector<32x32xf32> to vector<1x32x32xf32>
    tpu.vector_store %arg5[%c0_61, %c0_62, %c0_63], %97 {strides = array<i32>} : memref<1x32x32xf32, #tpu.memory_space<vmem>>, vector<1x32x32xf32>,
    %cst_64 = arith.constant dense<0.000000e+00> : vector<32xf32>
    %98 = vector.multi_reduction <add>, %94, %cst_64 [0] : vector<32x32xf32> to vector<32xf32>
    %99 = vector.shape_cast %98 : vector<32xf32> to vector<1x32xf32>
    %100 = arith.mulf %94, %94 : vector<32x32xf32>
    %cst_65 = arith.constant dense<0.000000e+00> : vector<32xf32>
    %101 = vector.multi_reduction <add>, %100, %cst_65 [0] : vector<32x32xf32> to vector<32xf32>
    %102 = vector.shape_cast %101 : vector<32xf32> to vector<1x32xf32>
    %103 = tpu.concatenate %99, %102 in 0 : vector<1x32xf32>, vector<1x32xf32> -> vector<2x32xf32>
    %c0_66 = arith.constant 0 : index
    %c0_67 = arith.constant 0 : index
    %c0_68 = arith.constant 0 : index
    %104 = vector.load %arg6[%c0_66, %c0_67, %c0_68] : memref<1x2x32xf32, #tpu.memory_space<vmem>>, vector<1x2x32xf32>
    %105 = vector.shape_cast %104 : vector<1x2x32xf32> to vector<2x32xf32>
    %106 = vector.shape_cast %103 : vector<2x32xf32> to vector<1x2x32xf32>
    tpu.vector_store %arg6[%c0_66, %c0_67, %c0_68], %106 {strides = array<i32>} : memref<1x2x32xf32, #tpu.memory_space<vmem>>, vector<1x2x32xf32>,
    return
  }
  func.func @transform_0(%arg0: i32) -> (i32, i32, i32, i32) {
    %c0_i32 = arith.constant 0 : i32
    %c0_i32_0 = arith.constant 0 : i32
    %c0_i32_1 = arith.constant 0 : i32
    %c0_i32_2 = arith.constant 0 : i32
    return %arg0, %c0_i32, %c0_i32_0, %c0_i32_1 : i32, i32, i32, i32
  }
  func.func @transform_1(%arg0: i32) -> (i32, i32) {
    %c0_i32 = arith.constant 0 : i32
    %c0_i32_0 = arith.constant 0 : i32
    %c0_i32_1 = arith.constant 0 : i32
    return %c0_i32, %c0_i32_0 : i32, i32
  }
  func.func @transform_2(%arg0: i32) -> i32 {
    %c0_i32 = arith.constant 0 : i32
    %c0_i32_0 = arith.constant 0 : i32
    return %c0_i32 : i32
  }
  func.func @transform_3(%arg0: i32) -> i32 {
    %c0_i32 = arith.constant 0 : i32
    %c0_i32_0 = arith.constant 0 : i32
    return %c0_i32 : i32
  }
  func.func @transform_4(%arg0: i32) -> (i32, i32, i32) {
    %c0_i32 = arith.constant 0 : i32
    %c0_i32_0 = arith.constant 0 : i32
    %c0_i32_1 = arith.constant 0 : i32
    return %arg0, %c0_i32, %c0_i32_0 : i32, i32, i32
  }
  func.func @transform_5(%arg0: i32) -> (i32, i32, i32) {
    %c0_i32 = arith.constant 0 : i32
    %c0_i32_0 = arith.constant 0 : i32
    %c0_i32_1 = arith.constant 0 : i32
    return %arg0, %c0_i32, %c0_i32_0 : i32, i32, i32
  }
}

module attributes {stable_mosaic.version = 11 : i64} {
  func.func @_bn_add_relu_kernel(%arg0: i32, %arg1: memref<1x4x256xf32, #tpu.memory_space<vmem>>, %arg2: memref<1x4x256xf32, #tpu.memory_space<vmem>>, %arg3: memref<4xf32, #tpu.memory_space<smem>>, %arg4: memref<4xf32, #tpu.memory_space<smem>>, %arg5: memref<1x4x256xf32, #tpu.memory_space<vmem>>) attributes {dimension_semantics = [#tpu.dimension_semantics<parallel>], iteration_bounds = array<i64: 2>, scalar_prefetch = 0 : i64, scratch_operands = 0 : i64, tpu.core_type = #tpu.core_type<tc>, window_params = [{transform_indices = @transform_0, window_bounds = array<i64: 1, 4, 256>}, {transform_indices = @transform_1, window_bounds = array<i64: 1, 4, 256>}, {transform_indices = @transform_2, window_bounds = array<i64: 4>}, {transform_indices = @transform_3, window_bounds = array<i64: 4>}, {transform_indices = @transform_4, window_bounds = array<i64: 1, 4, 256>}]} {
    %0 = tpu.iota {dimensions = array<i32: 1>} : vector<1x256xi32>
    %c4_i32 = arith.constant 4 : i32
    %c0_i32 = arith.constant 0 : i32
    %1 = arith.cmpi eq, %c4_i32, %c0_i32 : i32
    %c1_i32 = arith.constant 1 : i32
    %2 = arith.select %1, %c1_i32, %c4_i32 : i32
    %3 = vector.broadcast %2 : i32 to vector<1x256xi32>
    %4 = arith.remsi %0, %3 : vector<1x256xi32>
    %c0_i32_0 = arith.constant 0 : i32
    %5 = vector.broadcast %c0_i32_0 : i32 to vector<1x256xi32>
    %6 = arith.cmpi ne, %4, %5 : vector<1x256xi32>
    %c0_i32_1 = arith.constant 0 : i32
    %7 = vector.broadcast %c0_i32_1 : i32 to vector<1x256xi32>
    %8 = arith.cmpi slt, %4, %7 : vector<1x256xi32>
    %c0_i32_2 = arith.constant 0 : i32
    %9 = arith.cmpi slt, %2, %c0_i32_2 : i32
    %10 = vector.broadcast %9 : i1 to vector<1x256xi1>
    %11 = vector.broadcast %10 : vector<1x256xi1> to vector<1x256xi1>
    %12 = arith.xori %8, %11 : vector<1x256xi1>
    %13 = arith.andi %12, %6 : vector<1x256xi1>
    %14 = vector.broadcast %2 : i32 to vector<1x256xi32>
    %15 = arith.addi %4, %14 : vector<1x256xi32>
    %16 = arith.select %13, %15, %4 : vector<1x256xi1>, vector<1x256xi32>
    %cst = arith.constant 0.000000e+00 : f32
    %17 = vector.broadcast %cst : f32 to vector<1x256xf32>
    %cst_3 = arith.constant 0.000000e+00 : f32
    %18 = vector.broadcast %cst_3 : f32 to vector<1x256xf32>
    %c0_i32_4 = arith.constant 0 : i32
    %19 = vector.broadcast %c0_i32_4 : i32 to vector<1x256xi32>
    %20 = arith.cmpi eq, %16, %19 : vector<1x256xi32>
    %c0 = arith.constant 0 : index
    %21 = memref.load %arg3[%c0] : memref<4xf32, #tpu.memory_space<smem>>
    %22 = vector.broadcast %21 : f32 to vector<1x256xf32>
    %23 = arith.select %20, %22, %17 : vector<1x256xi1>, vector<1x256xf32>
    %c0_i32_5 = arith.constant 0 : i32
    %24 = vector.broadcast %c0_i32_5 : i32 to vector<1x256xi32>
    %25 = arith.cmpi eq, %16, %24 : vector<1x256xi32>
    %c0_6 = arith.constant 0 : index
    %26 = memref.load %arg4[%c0_6] : memref<4xf32, #tpu.memory_space<smem>>
    %27 = vector.broadcast %26 : f32 to vector<1x256xf32>
    %28 = arith.select %25, %27, %18 : vector<1x256xi1>, vector<1x256xf32>
    %c1_i32_7 = arith.constant 1 : i32
    %29 = vector.broadcast %c1_i32_7 : i32 to vector<1x256xi32>
    %30 = arith.cmpi eq, %16, %29 : vector<1x256xi32>
    %c1 = arith.constant 1 : index
    %31 = memref.load %arg3[%c1] : memref<4xf32, #tpu.memory_space<smem>>
    %32 = vector.broadcast %31 : f32 to vector<1x256xf32>
    %33 = arith.select %30, %32, %23 : vector<1x256xi1>, vector<1x256xf32>
    %c1_i32_8 = arith.constant 1 : i32
    %34 = vector.broadcast %c1_i32_8 : i32 to vector<1x256xi32>
    %35 = arith.cmpi eq, %16, %34 : vector<1x256xi32>
    %c1_9 = arith.constant 1 : index
    %36 = memref.load %arg4[%c1_9] : memref<4xf32, #tpu.memory_space<smem>>
    %37 = vector.broadcast %36 : f32 to vector<1x256xf32>
    %38 = arith.select %35, %37, %28 : vector<1x256xi1>, vector<1x256xf32>
    %c2_i32 = arith.constant 2 : i32
    %39 = vector.broadcast %c2_i32 : i32 to vector<1x256xi32>
    %40 = arith.cmpi eq, %16, %39 : vector<1x256xi32>
    %c2 = arith.constant 2 : index
    %41 = memref.load %arg3[%c2] : memref<4xf32, #tpu.memory_space<smem>>
    %42 = vector.broadcast %41 : f32 to vector<1x256xf32>
    %43 = arith.select %40, %42, %33 : vector<1x256xi1>, vector<1x256xf32>
    %c2_i32_10 = arith.constant 2 : i32
    %44 = vector.broadcast %c2_i32_10 : i32 to vector<1x256xi32>
    %45 = arith.cmpi eq, %16, %44 : vector<1x256xi32>
    %c2_11 = arith.constant 2 : index
    %46 = memref.load %arg4[%c2_11] : memref<4xf32, #tpu.memory_space<smem>>
    %47 = vector.broadcast %46 : f32 to vector<1x256xf32>
    %48 = arith.select %45, %47, %38 : vector<1x256xi1>, vector<1x256xf32>
    %c3_i32 = arith.constant 3 : i32
    %49 = vector.broadcast %c3_i32 : i32 to vector<1x256xi32>
    %50 = arith.cmpi eq, %16, %49 : vector<1x256xi32>
    %c3 = arith.constant 3 : index
    %51 = memref.load %arg3[%c3] : memref<4xf32, #tpu.memory_space<smem>>
    %52 = vector.broadcast %51 : f32 to vector<1x256xf32>
    %53 = arith.select %50, %52, %43 : vector<1x256xi1>, vector<1x256xf32>
    %c3_i32_12 = arith.constant 3 : i32
    %54 = vector.broadcast %c3_i32_12 : i32 to vector<1x256xi32>
    %55 = arith.cmpi eq, %16, %54 : vector<1x256xi32>
    %c3_13 = arith.constant 3 : index
    %56 = memref.load %arg4[%c3_13] : memref<4xf32, #tpu.memory_space<smem>>
    %57 = vector.broadcast %56 : f32 to vector<1x256xf32>
    %58 = arith.select %55, %57, %48 : vector<1x256xi1>, vector<1x256xf32>
    %c0_14 = arith.constant 0 : index
    %c0_15 = arith.constant 0 : index
    %c0_16 = arith.constant 0 : index
    %59 = vector.load %arg1[%c0_14, %c0_15, %c0_16] : memref<1x4x256xf32, #tpu.memory_space<vmem>>, vector<1x4x256xf32>
    %60 = vector.shape_cast %59 : vector<1x4x256xf32> to vector<4x256xf32>
    %c0_17 = arith.constant 0 : index
    %c0_18 = arith.constant 0 : index
    %c0_19 = arith.constant 0 : index
    %61 = vector.load %arg2[%c0_17, %c0_18, %c0_19] : memref<1x4x256xf32, #tpu.memory_space<vmem>>, vector<1x4x256xf32>
    %62 = vector.shape_cast %61 : vector<1x4x256xf32> to vector<4x256xf32>
    %63 = vector.broadcast %53 : vector<1x256xf32> to vector<4x256xf32>
    %64 = arith.mulf %60, %63 : vector<4x256xf32>
    %65 = vector.broadcast %58 : vector<1x256xf32> to vector<4x256xf32>
    %66 = arith.addf %64, %65 : vector<4x256xf32>
    %67 = arith.addf %66, %62 : vector<4x256xf32>
    %cst_20 = arith.constant 0.000000e+00 : f32
    %68 = vector.broadcast %cst_20 : f32 to vector<4x256xf32>
    %69 = arith.maximumf %67, %68 : vector<4x256xf32>
    %c0_21 = arith.constant 0 : index
    %c0_22 = arith.constant 0 : index
    %c0_23 = arith.constant 0 : index
    %70 = vector.load %arg5[%c0_21, %c0_22, %c0_23] : memref<1x4x256xf32, #tpu.memory_space<vmem>>, vector<1x4x256xf32>
    %71 = vector.shape_cast %70 : vector<1x4x256xf32> to vector<4x256xf32>
    %72 = vector.shape_cast %69 : vector<4x256xf32> to vector<1x4x256xf32>
    tpu.vector_store %arg5[%c0_21, %c0_22, %c0_23], %72 {strides = array<i32>} : memref<1x4x256xf32, #tpu.memory_space<vmem>>, vector<1x4x256xf32>,
    return
  }
  func.func @transform_0(%arg0: i32) -> (i32, i32, i32) {
    %c0_i32 = arith.constant 0 : i32
    %c0_i32_0 = arith.constant 0 : i32
    %c0_i32_1 = arith.constant 0 : i32
    return %arg0, %c0_i32, %c0_i32_0 : i32, i32, i32
  }
  func.func @transform_1(%arg0: i32) -> (i32, i32, i32) {
    %c0_i32 = arith.constant 0 : i32
    %c0_i32_0 = arith.constant 0 : i32
    %c0_i32_1 = arith.constant 0 : i32
    return %arg0, %c0_i32, %c0_i32_0 : i32, i32, i32
  }
  func.func @transform_2(%arg0: i32) -> i32 {
    %c0_i32 = arith.constant 0 : i32
    %c0_i32_0 = arith.constant 0 : i32
    return %c0_i32 : i32
  }
  func.func @transform_3(%arg0: i32) -> i32 {
    %c0_i32 = arith.constant 0 : i32
    %c0_i32_0 = arith.constant 0 : i32
    return %c0_i32 : i32
  }
  func.func @transform_4(%arg0: i32) -> (i32, i32, i32) {
    %c0_i32 = arith.constant 0 : i32
    %c0_i32_0 = arith.constant 0 : i32
    %c0_i32_1 = arith.constant 0 : i32
    return %arg0, %c0_i32, %c0_i32_0 : i32, i32, i32
  }
}

</mosaic_0001>

<llo_original>
// kernel: basic_block_3d_forward.5
$region0: #{basic_block_3d_forward.5}
  #allocation0 [shape = 'u32[]', space=smem, size = 0x4, offset = 0x4, fixed_abs, tag = 'smem constant byte address 0x4 - core index']
  #allocation1 [shape = 'u32[144,128]{1,0:T(1,128)}', space=vmem, size = 0x12000, scoped, tag = 'internal scratch']
  %s0 = inlined_call_operand.vmem [shape: f32[2,4,256], index: 0, kind: input, shape index: {}]
  %s1 = inlined_call_operand.vmem [shape: f32[2,4,256], index: 1, kind: input, shape index: {}]
  %s2 = inlined_call_operand.vmem [shape: f32[4], index: 2, kind: input, shape index: {}]
  %s3 = inlined_call_operand.vmem [shape: f32[4], index: 3, kind: input, shape index: {}]
  %s4 = inlined_call_operand.vmem [shape: f32[2,4,256], index: 4, kind: output, shape index: {}]
  %s5 = sld [smem:[#allocation0]]
  $region57: #{basic_block_3d_forward.5} parent=0
    _
  %s7 = ssub.s32 1, %s5
  %s8 = scalar_select 0, %s7, %s5
  $region1: #{basic_block_3d_forward.5} parent=0
    #allocation2 [shape = 'u8[512]{0}', space=smem, size = 0x200, scoped, tag = 'input window, operand 2, single buffered']
    #allocation3 [shape = 's32[2]{0}', space=sflag, size = 0x8, scoped, tag = 'scoped memory for basic_block_3d_forward.5']
    #allocation4 [shape = 'u8[512]{0}', space=smem, size = 0x200, scoped, tag = 'input window, operand 3, single buffered']
    #allocation5 [shape = 's32[1]{0}', space=sflag, size = 0x4, scoped, tag = 'scoped memory for basic_block_3d_forward.5']
    %9 = vsyncpa [#allocation3], 0
    %10 = vsyncpa [#allocation5], 0
    loop: start=0, step=1, limit=4
    $region2: #{basic_block_3d_forward.5} parent=1 // loop_pre_header
      _
    $region3: #{basic_block_3d_forward.5} parent=1 // loop_header
      %s12 = sphi 0, %s16
      %p13 = scmp.ge.s32.totalorder %s12, 4
      %s22 = sphi 0, %s24
      %s25 = sphi 0, %s22
      %s26 = sphi 0, %s25
      %s42 = sphi 0, %s26
      %s48 = sphi 0, %s50
      %s51 = sphi 0, %s48
      %s52 = sphi 0, %s51
      %s68 = sphi 0, %s52
      %s72 = sphi 0, %s72
      %s74 = sphi 0, %s72
      %s75 = sphi 0, %s74
      %s89 = sphi 0, %s75
      %s93 = sphi 0, %s93
      %s95 = sphi 0, %s93
      %s96 = sphi 0, %s95
      %s110 = sphi 0, %s96
      %s116 = sphi 0, %s118
      %s119 = sphi 0, %s116
      %s120 = sphi 0, %s119
      %s136 = sphi 0, %s120
    $region4: #{basic_block_3d_forward.5} parent=1 // loop_header_branch
      %15 = sbr.rel (%p13) target = $region8
    $region5: #{basic_block_3d_forward.5} parent=1 // loop_body
      %s17 = ssub.s32 %s12, 1
      %s18 = ssub.s32 %s12, 2
      %s19 = sadd.s32 %s12, 1
      %s20 = ssub.s32 %s12, %s19
      %p21 = scmp.eq.s32.totalorder %s20, 0
      %s23 = sadd.s32 %s22, 1
      %s24 = scalar_select %p21, %s22, %s23
      %p27 = pneg %p21
      %p28 = scmp.eq.s32.totalorder %s12, 1
      %p29 = por %p27, %p28
      %p30 = scmp.ne.s32.totalorder %s22, %s25
      %p31 = scmp.eq.s32.totalorder %s12, 0
      %p32 = por %p30, %p31
      %p33 = scmp.ne.s32.totalorder %s22, %s25
      %p34 = scmp.eq.s32.totalorder %s17, 1
      %p35 = por %p33, %p34
      %p36 = scmp.ne.s32.totalorder %s25, %s26
      %p37 = scmp.eq.s32.totalorder %s17, 0
      %p38 = por %p36, %p37
      %p39 = scmp.ne.s32.totalorder %s25, %s26
      %p40 = scmp.eq.s32.totalorder %s18, 1
      %p41 = por %p39, %p40
      %p43 = scmp.ne.s32.totalorder %s26, %s42
      %p44 = scmp.eq.s32.totalorder %s18, 0
      %p45 = por %p43, %p44
      %s46 = ssub.s32 %s12, %s19
      %p47 = scmp.eq.s32.totalorder %s46, 0
      %s49 = sadd.s32 %s48, 1
      %s50 = scalar_select %p47, %s48, %s49
      %p53 = pneg %p47
      %p54 = scmp.eq.s32.totalorder %s12, 1
      %p55 = por %p53, %p54
      %p56 = scmp.ne.s32.totalorder %s48, %s51
      %p57 = scmp.eq.s32.totalorder %s12, 0
      %p58 = por %p56, %p57
      %p59 = scmp.ne.s32.totalorder %s48, %s51
      %p60 = scmp.eq.s32.totalorder %s17, 1
      %p61 = por %p59, %p60
      %p62 = scmp.ne.s32.totalorder %s51, %s52
      %p63 = scmp.eq.s32.totalorder %s17, 0
      %p64 = por %p62, %p63
      %p65 = scmp.ne.s32.totalorder %s51, %s52
      %p66 = scmp.eq.s32.totalorder %s18, 1
      %p67 = por %p65, %p66
      %p69 = scmp.ne.s32.totalorder %s52, %s68
      %p70 = scmp.eq.s32.totalorder %s18, 0
      %p71 = por %p69, %p70
      %s73 = sadd.s32 %s72, 1
      %p76 = scmp.eq.s32.totalorder %s12, 1
      %p77 = scmp.ne.s32.totalorder %s72, %s74
      %p78 = scmp.eq.s32.totalorder %s12, 0
      %p79 = por %p77, %p78
      %p80 = scmp.ne.s32.totalorder %s72, %s74
      %p81 = scmp.eq.s32.totalorder %s17, 1
      %p82 = por %p80, %p81
      %p83 = scmp.ne.s32.totalorder %s74, %s75
      %p84 = scmp.eq.s32.totalorder %s17, 0
      %p85 = por %p83, %p84
      %p86 = scmp.ne.s32.totalorder %s74, %s75
      %p87 = scmp.eq.s32.totalorder %s18, 1
      %p88 = por %p86, %p87
      %p90 = scmp.ne.s32.totalorder %s75, %s89
      %p91 = scmp.eq.s32.totalorder %s18, 0
      %p92 = por %p90, %p91
      %s94 = sadd.s32 %s93, 1
      %p97 = scmp.eq.s32.totalorder %s12, 1
      %p98 = scmp.ne.s32.totalorder %s93, %s95
      %p99 = scmp.eq.s32.totalorder %s12, 0
      %p100 = por %p98, %p99
      %p101 = scmp.ne.s32.totalorder %s93, %s95
      %p102 = scmp.eq.s32.totalorder %s17, 1
      %p103 = por %p101, %p102
      %p104 = scmp.ne.s32.totalorder %s95, %s96
      %p105 = scmp.eq.s32.totalorder %s17, 0
      %p106 = por %p104, %p105
      %p107 = scmp.ne.s32.totalorder %s95, %s96
      %p108 = scmp.eq.s32.totalorder %s18, 1
      %p109 = por %p107, %p108
      %p111 = scmp.ne.s32.totalorder %s96, %s110
      %p112 = scmp.eq.s32.totalorder %s18, 0
      %p113 = por %p111, %p112
      %s114 = ssub.s32 %s12, %s19
      %p115 = scmp.eq.s32.totalorder %s114, 0
      %s117 = sadd.s32 %s116, 1
      %s118 = scalar_select %p115, %s116, %s117
      %p121 = pneg %p115
      %p122 = scmp.eq.s32.totalorder %s12, 1
      %p123 = por %p121, %p122
      %p124 = scmp.ne.s32.totalorder %s116, %s119
      %p125 = scmp.eq.s32.totalorder %s12, 0
      %p126 = por %p124, %p125
      %p127 = scmp.ne.s32.totalorder %s116, %s119
      %p128 = scmp.eq.s32.totalorder %s17, 1
      %p129 = por %p127, %p128
      %p130 = scmp.ne.s32.totalorder %s119, %s120
      %p131 = scmp.eq.s32.totalorder %s17, 0
      %p132 = por %p130, %p131
      %p133 = scmp.ne.s32.totalorder %s119, %s120
      %p134 = scmp.eq.s32.totalorder %s18, 1
      %p135 = por %p133, %p134
      %p137 = scmp.ne.s32.totalorder %s120, %s136
      %p138 = scmp.eq.s32.totalorder %s18, 0
      %p139 = por %p137, %p138
      %p140 = scmp.le.s32.totalorder 1, %s12
      %p141 = scmp.lt.s32.totalorder %s12, 3
      %p142 = pnand %p140, %p141
      %p143 = pneg %p142
      // Predicated region
      $region9: #{basic_block_3d_forward.5} parent=5 // pred_check
        _
      $region10: #{basic_block_3d_forward.5} parent=5 // pred_check_branch
        %145 = sbr.rel (%p142) target = $region12
      $region11: #{basic_block_3d_forward.5} parent=5 // pred_region
        %s146 = ssub.s32 %s12, 1
        // Predicated region
        $region13: #{basic_block_3d_forward.5} parent=11 // pred_check
          %p147 = pneg %p85
        $region14: #{basic_block_3d_forward.5} parent=11 // pred_check_branch
          %149 = sbr.rel (%p147) target = $region16
        $region15: #{basic_block_3d_forward.5} parent=11 // pred_region
          %s151 = ssub.s32 16, 16
          %152 = vsyncadd [#allocation3], %s151
          %s154 = sshll.u32 %s2, 4
          %s155 = int_to_ptr.vmem [resolvable:$true] %s154
          %157 = dma.vmem_to_smem %s155, 16, [#allocation2], [#allocation3]
        $region16: #{basic_block_3d_forward.5} parent=11 // pred_fallthru
          _
        // Predicated region
        $region17: #{basic_block_3d_forward.5} parent=11 // pred_check
          %p158 = pneg %p106
        $region18: #{basic_block_3d_forward.5} parent=11 // pred_check_branch
          %160 = sbr.rel (%p158) target = $region20
        $region19: #{basic_block_3d_forward.5} parent=11 // pred_region
          %s162 = ssub.s32 16, 16
          %163 = vsyncadd [#allocation5], %s162
          %s165 = sshll.u32 %s3, 4
          %s166 = int_to_ptr.vmem [resolvable:$true] %s165
          %168 = dma.vmem_to_smem %s166, 16, [#allocation4], [#allocation5]
        $region20: #{basic_block_3d_forward.5} parent=11 // pred_fallthru
          _
      $region12: #{basic_block_3d_forward.5} parent=5 // pred_fallthru
        _
      %p169 = scmp.lt.s32.totalorder %s12, 2
      // Predicated region
      $region21: #{basic_block_3d_forward.5} parent=5 // pred_check
        %p170 = pneg %p169
      $region22: #{basic_block_3d_forward.5} parent=5 // pred_check_branch
        %172 = sbr.rel (%p170) target = $region24
      $region23: #{basic_block_3d_forward.5} parent=5 // pred_region
        // Predicated region
        $region25: #{basic_block_3d_forward.5} parent=23 // pred_check
          %p173 = pneg %p32
        $region26: #{basic_block_3d_forward.5} parent=23 // pred_check_branch
          %175 = sbr.rel (%p173) target = $region28
        $region27: #{basic_block_3d_forward.5} parent=23 // pred_region
          %p176 = scmp.lt.s32.totalorder %s12, 1
          %s177 = scalar_select %p176, %s12, 1
          %s178 = smul.addr %s177, 2
          %s179 = smul.addr %s178, 4
          %s180 = scalar_lea.vmem %s0, %s179
        $region28: #{basic_block_3d_forward.5} parent=23 // pred_fallthru
          _
        // Predicated region
        $region29: #{basic_block_3d_forward.5} parent=23 // pred_check
          %p181 = pneg %p58
        $region30: #{basic_block_3d_forward.5} parent=23 // pred_check_branch
          %183 = sbr.rel (%p181) target = $region32
        $region31: #{basic_block_3d_forward.5} parent=23 // pred_region
          %p184 = scmp.lt.s32.totalorder %s12, 1
          %s185 = scalar_select %p184, %s12, 1
          %s186 = smul.addr %s185, 2
          %s187 = smul.addr %s186, 4
          %s188 = scalar_lea.vmem %s1, %s187
        $region32: #{basic_block_3d_forward.5} parent=23 // pred_fallthru
          _
      $region24: #{basic_block_3d_forward.5} parent=5 // pred_fallthru
        _
      %p189 = scmp.le.s32.totalorder 1, %s12
      %p190 = scmp.lt.s32.totalorder %s12, 3
      %p191 = pnand %p189, %p190
      %p192 = pneg %p191
      // Predicated region
      $region33: #{basic_block_3d_forward.5} parent=5 // pred_check
        _
      $region34: #{basic_block_3d_forward.5} parent=5 // pred_check_branch
        %194 = sbr.rel (%p191) target = $region36
      $region35: #{basic_block_3d_forward.5} parent=5 // pred_region
        %s195 = ssub.s32 %s12, 1
        // Predicated region
        $region37: #{basic_block_3d_forward.5} parent=35 // pred_check
          %p196 = pneg %p85
        $region38: #{basic_block_3d_forward.5} parent=35 // pred_check_branch
          %198 = sbr.rel (%p196) target = $region40
        $region39: #{basic_block_3d_forward.5} parent=35 // pred_region
          %199 = dma.done [#allocation3], 16
        $region40: #{basic_block_3d_forward.5} parent=35 // pred_fallthru
          _
        // Predicated region
        $region41: #{basic_block_3d_forward.5} parent=35 // pred_check
          %p200 = pneg %p106
        $region42: #{basic_block_3d_forward.5} parent=35 // pred_check_branch
          %202 = sbr.rel (%p200) target = $region44
        $region43: #{basic_block_3d_forward.5} parent=35 // pred_region
          %203 = dma.done [#allocation5], 16
        $region44: #{basic_block_3d_forward.5} parent=35 // pred_fallthru
          _
        %204 = sfence
        %p205 = scmp.lt.s32.totalorder %s17, 1
        %s206 = scalar_select %p205, %s17, 1
        %s207 = smul.addr %s206, 2
        %s208 = smul.addr %s207, 4
        %s209 = scalar_lea.vmem %s0, %s208
        %p210 = pneg %p38
        %p211 = pneg %p35
        %p212 = scmp.lt.s32.totalorder %s17, 1
        %s213 = scalar_select %p212, %s17, 1
        %s214 = smul.addr %s213, 2
        %s215 = smul.addr %s214, 4
        %s216 = scalar_lea.vmem %s1, %s215
        %p217 = pneg %p64
        %p218 = pneg %p61
        %p219 = pneg %p85
        %p220 = pneg %p82
        %p221 = pneg %p106
        %p222 = pneg %p103
        %p223 = pneg %p132
        %p224 = pneg %p129
        %p225 = scmp.lt.s32.totalorder %s17, 1
        %s226 = scalar_select %p225, %s17, 1
        %s227 = smul.addr %s226, 2
        %s228 = smul.addr %s227, 4
        %s229 = scalar_lea.vmem %s4, %s228
        %p230 = scmp.lt.s32.totalorder %s17, 1
        %s231 = scalar_select %p230, %s17, 1
        %s232 = smul.addr %s231, 2
        %s233 = smul.addr %s232, 4
        %s234 = scalar_lea.vmem %s0, %s233
        %p235 = scmp.lt.s32.totalorder %s17, 1
        %s236 = scalar_select %p235, %s17, 1
        %s237 = smul.addr %s236, 2
        %s238 = smul.addr %s237, 4
        %s239 = scalar_lea.vmem %s1, %s238
        %p240 = scmp.lt.s32.totalorder %s17, 1
        %s241 = scalar_select %p240, %s17, 1
        %s242 = smul.addr %s241, 2
        %s243 = smul.addr %s242, 4
        %s244 = scalar_lea.vmem %s4, %s243
        %v245 = vlaneseq
        %v246 = vand.u32 %v245, 127
        %v247 = vadd.s32 %v246, 128
        %vm248 = vcmp.lt.s32.totalorder %v246, 0
        %v249 = vsub.s32 0, %v246
        %v250 = vsel %vm248, %v249, %v246
        %v251 = vshrl.u32 %v250, 2
        %v252 = vand.u32 %v250, 3
        %v253 = vsub.s32 0, %v252
        %v254 = vsel %vm248, %v253, %v252
        %vm255 = vcmp.lt.s32.totalorder %v247, 0
        %v256 = vsub.s32 0, %v247
        %v257 = vsel %vm255, %v256, %v247
        %v258 = vshrl.u32 %v257, 2
        %v259 = vand.u32 %v257, 3
        %v260 = vsub.s32 0, %v259
        %v261 = vsel %vm255, %v260, %v259
        %vm262 = vcmp.ne.s32.totalorder %v254, 0
        %vm263 = vcmp.ne.s32.totalorder %v261, 0
        %vm264 = vcmp.lt.s32.totalorder %v254, 0
        %vm265 = vcmp.lt.s32.totalorder %v261, 0
        %vm266 = vmand %vm264, %vm262
        %vm267 = vmand %vm265, %vm263
        %v268 = vadd.s32 %v254, 4
        %v269 = vadd.s32 %v261, 4
        %v270 = vsel %vm266, %v268, %v254
        %v271 = vsel %vm267, %v269, %v261
        %vm272 = vcmp.eq.s32.totalorder %v270, 0
        %vm273 = vcmp.eq.s32.totalorder %v271, 0
        %s274 = sld [smem:[#allocation2]]
        %v275 = vstv %s274
        %v276 = vsel %vm272, %v275, 0.0
        %v277 = vsel %vm273, %v275, 0.0
        %s278 = sld [smem:[#allocation4]]
        %v279 = vstv %s278
        %v280 = vsel %vm272, %v279, 0.0
        %v281 = vsel %vm273, %v279, 0.0
        %vm282 = vcmp.eq.s32.totalorder %v270, 1
        %vm283 = vcmp.eq.s32.totalorder %v271, 1
        %s284 = sld [smem:[#allocation2 + $0x1]]
        %v285 = vstv %s284
        %v286 = vsel %vm282, %v285, %v276
        %v287 = vsel %vm283, %v285, %v277
        %s288 = sld [smem:[#allocation4 + $0x1]]
        %v289 = vstv %s288
        %v290 = vsel %vm282, %v289, %v280
        %v291 = vsel %vm283, %v289, %v281
        %vm292 = vcmp.eq.s32.totalorder %v270, 2
        %vm293 = vcmp.eq.s32.totalorder %v271, 2
        %s294 = sld [smem:[#allocation2 + $0x2]]
        %v295 = vstv %s294
        %v296 = vsel %vm292, %v295, %v286
        %v297 = vsel %vm293, %v295, %v287
        %s298 = sld [smem:[#allocation4 + $0x2]]
        %v299 = vstv %s298
        %v300 = vsel %vm292, %v299, %v290
        %v301 = vsel %vm293, %v299, %v291
        %vm302 = vcmp.eq.s32.totalorder %v270, 3
        %vm303 = vcmp.eq.s32.totalorder %v271, 3
        %s304 = sld [smem:[#allocation2 + $0x3]]
        %v305 = vstv %s304
        %v306 = vsel %vm302, %v305, %v296
        %v307 = vsel %vm303, %v305, %v297
        %s308 = sld [smem:[#allocation4 + $0x3]]
        %v309 = vstv %s308
        %v310 = vsel %vm302, %v309, %v300
        %v311 = vsel %vm303, %v309, %v301
        %v312 = vld [vmem:[%s234] sm:$0xff]
        %v313 = vld [vmem:[%s239] sm:$0xff]
        %v316 = vcombine.low %v306, %v307
        %v318 = vmul.f32 %v312, %v316
        %v321 = vcombine.low %v310, %v311
        %v323 = vadd.f32 %v318, %v321
        %v324 = vadd.f32 %v323, %v313
        %v325 = vmax.f32 %v324, 0.0
        %326 = vst [vmem:[%s244] sm:$0xff] %v325
        %p327 = scmp.lt.s32.totalorder %s17, 1
        %s328 = scalar_select %p327, %s17, 1
        %s329 = smul.addr %s328, 2
        %s330 = smul.addr %s329, 4
        %s331 = scalar_lea.vmem %s4, %s330
        // Predicated region
        $region45: #{basic_block_3d_forward.5} parent=35 // pred_check
          %p332 = pneg %p129
        $region46: #{basic_block_3d_forward.5} parent=35 // pred_check_branch
          %334 = sbr.rel (%p332) target = $region48
        $region47: #{basic_block_3d_forward.5} parent=35 // pred_region
          _
        $region48: #{basic_block_3d_forward.5} parent=35 // pred_fallthru
          _
      $region36: #{basic_block_3d_forward.5} parent=5 // pred_fallthru
        _
      %p335 = scmp.le.s32.totalorder 2, %s12
      // Predicated region
      $region49: #{basic_block_3d_forward.5} parent=5 // pred_check
        %p336 = pneg %p335
      $region50: #{basic_block_3d_forward.5} parent=5 // pred_check_branch
        %338 = sbr.rel (%p336) target = $region52
      $region51: #{basic_block_3d_forward.5} parent=5 // pred_region
        %s339 = ssub.s32 %s12, 2
        // Predicated region
        $region53: #{basic_block_3d_forward.5} parent=51 // pred_check
          %p340 = pneg %p135
        $region54: #{basic_block_3d_forward.5} parent=51 // pred_check_branch
          %342 = sbr.rel (%p340) target = $region56
        $region55: #{basic_block_3d_forward.5} parent=51 // pred_region
          %p343 = scmp.lt.s32.totalorder %s18, 1
          %s344 = scalar_select %p343, %s18, 1
          %s345 = smul.addr %s344, 2
          %s346 = smul.addr %s345, 4
          %s347 = scalar_lea.vmem %s4, %s346
        $region56: #{basic_block_3d_forward.5} parent=51 // pred_fallthru
          _
      $region52: #{basic_block_3d_forward.5} parent=5 // pred_fallthru
        _
    $region6: #{basic_block_3d_forward.5} parent=1 // loop_footer
      %s16 = sadd.s32 1, %s12
    $region7: #{basic_block_3d_forward.5} parent=1 // loop_footer_branch
      %11 = sbr.rel target = $region3
    $region8: #{basic_block_3d_forward.5} parent=1 // loop_exit
      _
    %348 = vsyncpa [#allocation3], 1
    %s349 = scalar_lea.sflag [#allocation3], 1
    %350 = vsyncpa %s349, 1
    %351 = vsyncpa [#allocation5], 1

// kernel: basic_block_3d_forward.3
$region0: #{basic_block_3d_forward.3}
  #allocation0 [shape = 'u32[]', space=smem, size = 0x4, offset = 0x4, fixed_abs, tag = 'smem constant byte address 0x4 - core index']
  #allocation1 [shape = 'u32[144,128]{1,0:T(1,128)}', space=vmem, size = 0x12000, scoped, tag = 'internal scratch']
  #allocation2 [shape = 'f32[6,10,40]{2,1,0:T(8,128)}', space=vmem, size = 0xc000, scoped, tag = 'scratch operand']
  %s0 = inlined_call_operand.vmem [shape: f32[2,4,8,32], index: 0, kind: input, shape index: {}]
  %s1 = inlined_call_operand.vmem [shape: f32[384,32], index: 1, kind: input, shape index: {}]
  %s2 = inlined_call_operand.vmem [shape: f32[4], index: 2, kind: input, shape index: {}, may-alias: {2,3}]
  %s3 = inlined_call_operand.vmem [shape: f32[4], index: 3, kind: input, shape index: {}, may-alias: {2,3}]
  %s4 = inlined_call_operand.vmem [shape: f32[2,32,32], index: 4, kind: output, shape index: {0}]
  %s5 = inlined_call_operand.vmem [shape: f32[2,2,32], index: 5, kind: output, shape index: {1}]
  %6 = xla_tuple %s4, %s5
  %s7 = sld [smem:[#allocation0]]
  $region65: #{basic_block_3d_forward.3} parent=0
    _
  %s9 = ssub.s32 1, %s7
  %s10 = scalar_select 0, %s9, %s7
  $region1: #{basic_block_3d_forward.3} parent=0
    #allocation3 [shape = 'u8[512]{0}', space=smem, size = 0x200, scoped, tag = 'input window, operand 2, single buffered']
    #allocation4 [shape = 's32[2]{0}', space=sflag, size = 0x8, scoped, tag = 'scoped memory for basic_block_3d_forward.3']
    #allocation5 [shape = 'u8[512]{0}', space=smem, size = 0x200, scoped, tag = 'input window, operand 3, single buffered']
    #allocation6 [shape = 's32[1]{0}', space=sflag, size = 0x4, scoped, tag = 'scoped memory for basic_block_3d_forward.3']
    %11 = vsyncpa [#allocation4], 0
    %12 = vsyncpa [#allocation6], 0
    loop: start=0, step=1, limit=4
    $region2: #{basic_block_3d_forward.3} parent=1 // loop_pre_header
      _
    $region3: #{basic_block_3d_forward.3} parent=1 // loop_header
      %s14 = sphi 0, %s18
      %p15 = scmp.ge.s32.totalorder %s14, 4
      %s24 = sphi 0, %s26
      %s27 = sphi 0, %s24
      %s28 = sphi 0, %s27
      %s44 = sphi 0, %s28
      %s48 = sphi 0, %s48
      %s50 = sphi 0, %s48
      %s51 = sphi 0, %s50
      %s65 = sphi 0, %s51
      %s69 = sphi 0, %s69
      %s71 = sphi 0, %s69
      %s72 = sphi 0, %s71
      %s86 = sphi 0, %s72
      %s90 = sphi 0, %s90
      %s92 = sphi 0, %s90
      %s93 = sphi 0, %s92
      %s107 = sphi 0, %s93
      %s113 = sphi 0, %s115
      %s116 = sphi 0, %s113
      %s117 = sphi 0, %s116
      %s133 = sphi 0, %s117
      %s139 = sphi 0, %s141
      %s142 = sphi 0, %s139
      %s143 = sphi 0, %s142
      %s159 = sphi 0, %s143
    $region4: #{basic_block_3d_forward.3} parent=1 // loop_header_branch
      %17 = sbr.rel (%p15) target = $region8
    $region5: #{basic_block_3d_forward.3} parent=1 // loop_body
      %s19 = ssub.s32 %s14, 1
      %s20 = ssub.s32 %s14, 2
      %s21 = sadd.s32 %s14, 1
      %s22 = ssub.s32 %s14, %s21
      %p23 = scmp.eq.s32.totalorder %s22, 0
      %s25 = sadd.s32 %s24, 1
      %s26 = scalar_select %p23, %s24, %s25
      %p29 = pneg %p23
      %p30 = scmp.eq.s32.totalorder %s14, 1
      %p31 = por %p29, %p30
      %p32 = scmp.ne.s32.totalorder %s24, %s27
      %p33 = scmp.eq.s32.totalorder %s14, 0
      %p34 = por %p32, %p33
      %p35 = scmp.ne.s32.totalorder %s24, %s27
      %p36 = scmp.eq.s32.totalorder %s19, 1
      %p37 = por %p35, %p36
      %p38 = scmp.ne.s32.totalorder %s27, %s28
      %p39 = scmp.eq.s32.totalorder %s19, 0
      %p40 = por %p38, %p39
      %p41 = scmp.ne.s32.totalorder %s27, %s28
      %p42 = scmp.eq.s32.totalorder %s20, 1
      %p43 = por %p41, %p42
      %p45 = scmp.ne.s32.totalorder %s28, %s44
      %p46 = scmp.eq.s32.totalorder %s20, 0
      %p47 = por %p45, %p46
      %s49 = sadd.s32 %s48, 1
      %p52 = scmp.eq.s32.totalorder %s14, 1
      %p53 = scmp.ne.s32.totalorder %s48, %s50
      %p54 = scmp.eq.s32.totalorder %s14, 0
      %p55 = por %p53, %p54
      %p56 = scmp.ne.s32.totalorder %s48, %s50
      %p57 = scmp.eq.s32.totalorder %s19, 1
      %p58 = por %p56, %p57
      %p59 = scmp.ne.s32.totalorder %s50, %s51
      %p60 = scmp.eq.s32.totalorder %s19, 0
      %p61 = por %p59, %p60
      %p62 = scmp.ne.s32.totalorder %s50, %s51
      %p63 = scmp.eq.s32.totalorder %s20, 1
      %p64 = por %p62, %p63
      %p66 = scmp.ne.s32.totalorder %s51, %s65
      %p67 = scmp.eq.s32.totalorder %s20, 0
      %p68 = por %p66, %p67
      %s70 = sadd.s32 %s69, 1
      %p73 = scmp.eq.s32.totalorder %s14, 1
      %p74 = scmp.ne.s32.totalorder %s69, %s71
      %p75 = scmp.eq.s32.totalorder %s14, 0
      %p76 = por %p74, %p75
      %p77 = scmp.ne.s32.totalorder %s69, %s71
      %p78 = scmp.eq.s32.totalorder %s19, 1
      %p79 = por %p77, %p78
      %p80 = scmp.ne.s32.totalorder %s71, %s72
      %p81 = scmp.eq.s32.totalorder %s19, 0
      %p82 = por %p80, %p81
      %p83 = scmp.ne.s32.totalorder %s71, %s72
      %p84 = scmp.eq.s32.totalorder %s20, 1
      %p85 = por %p83, %p84
      %p87 = scmp.ne.s32.totalorder %s72, %s86
      %p88 = scmp.eq.s32.totalorder %s20, 0
      %p89 = por %p87, %p88
      %s91 = sadd.s32 %s90, 1
      %p94 = scmp.eq.s32.totalorder %s14, 1
      %p95 = scmp.ne.s32.totalorder %s90, %s92
      %p96 = scmp.eq.s32.totalorder %s14, 0
      %p97 = por %p95, %p96
      %p98 = scmp.ne.s32.totalorder %s90, %s92
      %p99 = scmp.eq.s32.totalorder %s19, 1
      %p100 = por %p98, %p99
      %p101 = scmp.ne.s32.totalorder %s92, %s93
      %p102 = scmp.eq.s32.totalorder %s19, 0
      %p103 = por %p101, %p102
      %p104 = scmp.ne.s32.totalorder %s92, %s93
      %p105 = scmp.eq.s32.totalorder %s20, 1
      %p106 = por %p104, %p105
      %p108 = scmp.ne.s32.totalorder %s93, %s107
      %p109 = scmp.eq.s32.totalorder %s20, 0
      %p110 = por %p108, %p109
      %s111 = ssub.s32 %s14, %s21
      %p112 = scmp.eq.s32.totalorder %s111, 0
      %s114 = sadd.s32 %s113, 1
      %s115 = scalar_select %p112, %s113, %s114
      %p118 = pneg %p112
      %p119 = scmp.eq.s32.totalorder %s14, 1
      %p120 = por %p118, %p119
      %p121 = scmp.ne.s32.totalorder %s113, %s116
      %p122 = scmp.eq.s32.totalorder %s14, 0
      %p123 = por %p121, %p122
      %p124 = scmp.ne.s32.totalorder %s113, %s116
      %p125 = scmp.eq.s32.totalorder %s19, 1
      %p126 = por %p124, %p125
      %p127 = scmp.ne.s32.totalorder %s116, %s117
      %p128 = scmp.eq.s32.totalorder %s19, 0
      %p129 = por %p127, %p128
      %p130 = scmp.ne.s32.totalorder %s116, %s117
      %p131 = scmp.eq.s32.totalorder %s20, 1
      %p132 = por %p130, %p131
      %p134 = scmp.ne.s32.totalorder %s117, %s133
      %p135 = scmp.eq.s32.totalorder %s20, 0
      %p136 = por %p134, %p135
      %s137 = ssub.s32 %s14, %s21
      %p138 = scmp.eq.s32.totalorder %s137, 0
      %s140 = sadd.s32 %s139, 1
      %s141 = scalar_select %p138, %s139, %s140
      %p144 = pneg %p138
      %p145 = scmp.eq.s32.totalorder %s14, 1
      %p146 = por %p144, %p145
      %p147 = scmp.ne.s32.totalorder %s139, %s142
      %p148 = scmp.eq.s32.totalorder %s14, 0
      %p149 = por %p147, %p148
      %p150 = scmp.ne.s32.totalorder %s139, %s142
      %p151 = scmp.eq.s32.totalorder %s19, 1
      %p152 = por %p150, %p151
      %p153 = scmp.ne.s32.totalorder %s142, %s143
      %p154 = scmp.eq.s32.totalorder %s19, 0
      %p155 = por %p153, %p154
      %p156 = scmp.ne.s32.totalorder %s142, %s143
      %p157 = scmp.eq.s32.totalorder %s20, 1
      %p158 = por %p156, %p157
      %p160 = scmp.ne.s32.totalorder %s143, %s159
      %p161 = scmp.eq.s32.totalorder %s20, 0
      %p162 = por %p160, %p161
      %p163 = scmp.le.s32.totalorder 1, %s14
      %p164 = scmp.lt.s32.totalorder %s14, 3
      %p165 = pnand %p163, %p164
      %p166 = pneg %p165
      // Predicated region
      $region9: #{basic_block_3d_forward.3} parent=5 // pred_check
        _
      $region10: #{basic_block_3d_forward.3} parent=5 // pred_check_branch
        %168 = sbr.rel (%p165) target = $region12
      $region11: #{basic_block_3d_forward.3} parent=5 // pred_region
        %s169 = ssub.s32 %s14, 1
        // Predicated region
        $region13: #{basic_block_3d_forward.3} parent=11 // pred_check
          %p170 = pneg %p61
        $region14: #{basic_block_3d_forward.3} parent=11 // pred_check_branch
          %172 = sbr.rel (%p170) target = $region16
        $region15: #{basic_block_3d_forward.3} parent=11 // pred_region
          _
        $region16: #{basic_block_3d_forward.3} parent=11 // pred_fallthru
          _
        // Predicated region
        $region17: #{basic_block_3d_forward.3} parent=11 // pred_check
          %p173 = pneg %p82
        $region18: #{basic_block_3d_forward.3} parent=11 // pred_check_branch
          %175 = sbr.rel (%p173) target = $region20
        $region19: #{basic_block_3d_forward.3} parent=11 // pred_region
          %s177 = ssub.s32 16, 16
          %178 = vsyncadd [#allocation4], %s177
          %s180 = sshll.u32 %s2, 4
          %s181 = int_to_ptr.vmem [resolvable:$true] %s180
          %183 = dma.vmem_to_smem %s181, 16, [#allocation3], [#allocation4]
        $region20: #{basic_block_3d_forward.3} parent=11 // pred_fallthru
          _
        // Predicated region
        $region21: #{basic_block_3d_forward.3} parent=11 // pred_check
          %p184 = pneg %p103
        $region22: #{basic_block_3d_forward.3} parent=11 // pred_check_branch
          %186 = sbr.rel (%p184) target = $region24
        $region23: #{basic_block_3d_forward.3} parent=11 // pred_region
          %s188 = ssub.s32 16, 16
          %189 = vsyncadd [#allocation6], %s188
          %s191 = sshll.u32 %s3, 4
          %s192 = int_to_ptr.vmem [resolvable:$true] %s191
          %194 = dma.vmem_to_smem %s192, 16, [#allocation5], [#allocation6]
        $region24: #{basic_block_3d_forward.3} parent=11 // pred_fallthru
          _
      $region12: #{basic_block_3d_forward.3} parent=5 // pred_fallthru
        _
      %p195 = scmp.lt.s32.totalorder %s14, 2
      // Predicated region
      $region25: #{basic_block_3d_forward.3} parent=5 // pred_check
        %p196 = pneg %p195
      $region26: #{basic_block_3d_forward.3} parent=5 // pred_check_branch
        %198 = sbr.rel (%p196) target = $region28
      $region27: #{basic_block_3d_forward.3} parent=5 // pred_region
        // Predicated region
        $region29: #{basic_block_3d_forward.3} parent=27 // pred_check
          %p199 = pneg %p34
        $region30: #{basic_block_3d_forward.3} parent=27 // pred_check_branch
          %201 = sbr.rel (%p199) target = $region32
        $region31: #{basic_block_3d_forward.3} parent=27 // pred_region
          %p202 = scmp.lt.s32.totalorder %s14, 1
          %s203 = scalar_select %p202, %s14, 1
          %s204 = smul.addr %s203, 4
          %s205 = smul.addr %s204, 8
          %s206 = scalar_lea.vmem %s0, %s205
        $region32: #{basic_block_3d_forward.3} parent=27 // pred_fallthru
          _
      $region28: #{basic_block_3d_forward.3} parent=5 // pred_fallthru
        _
      %p207 = scmp.le.s32.totalorder 1, %s14
      %p208 = scmp.lt.s32.totalorder %s14, 3
      %p209 = pnand %p207, %p208
      %p210 = pneg %p209
      // Predicated region
      $region33: #{basic_block_3d_forward.3} parent=5 // pred_check
        _
      $region34: #{basic_block_3d_forward.3} parent=5 // pred_check_branch
        %212 = sbr.rel (%p209) target = $region36
      $region35: #{basic_block_3d_forward.3} parent=5 // pred_region
        %s213 = ssub.s32 %s14, 1
        // Predicated region
        $region37: #{basic_block_3d_forward.3} parent=35 // pred_check
          %p214 = pneg %p82
        $region38: #{basic_block_3d_forward.3} parent=35 // pred_check_branch
          %216 = sbr.rel (%p214) target = $region40
        $region39: #{basic_block_3d_forward.3} parent=35 // pred_region
          %217 = dma.done [#allocation4], 16
        $region40: #{basic_block_3d_forward.3} parent=35 // pred_fallthru
          _
        // Predicated region
        $region41: #{basic_block_3d_forward.3} parent=35 // pred_check
          %p218 = pneg %p103
        $region42: #{basic_block_3d_forward.3} parent=35 // pred_check_branch
          %220 = sbr.rel (%p218) target = $region44
        $region43: #{basic_block_3d_forward.3} parent=35 // pred_region
          %221 = dma.done [#allocation6], 16
        $region44: #{basic_block_3d_forward.3} parent=35 // pred_fallthru
          _
        %222 = sfence
        %p223 = scmp.lt.s32.totalorder %s19, 1
        %s224 = scalar_select %p223, %s19, 1
        %s225 = smul.addr %s224, 4
        %s226 = smul.addr %s225, 8
        %s227 = scalar_lea.vmem %s0, %s226
        %p228 = pneg %p40
        %p229 = pneg %p37
        %p230 = pneg %p61
        %p231 = pneg %p58
        %p232 = pneg %p82
        %p233 = pneg %p79
        %p234 = pneg %p103
        %p235 = pneg %p100
        %p236 = pneg %p129
        %p237 = pneg %p126
        %p238 = scmp.lt.s32.totalorder %s19, 1
        %s239 = scalar_select %p238, %s19, 1
        %s240 = smul.addr %s239, 4
        %s241 = smul.addr %s240, 8
        %s242 = scalar_lea.vmem %s4, %s241
        %p243 = pneg %p155
        %p244 = pneg %p152
        %p245 = scmp.lt.s32.totalorder %s19, 1
        %s246 = scalar_select %p245, %s19, 1
        %s247 = smul.addr %s246, 2
        %s248 = scalar_lea.vmem %s5, %s247
        %p249 = scmp.lt.s32.totalorder %s19, 1
        %s250 = scalar_select %p249, %s19, 1
        %s251 = smul.addr %s250, 4
        %s252 = smul.addr %s251, 8
        %s253 = scalar_lea.vmem %s0, %s252
        %p254 = scmp.lt.s32.totalorder %s19, 1
        %s255 = scalar_select %p254, %s19, 1
        %s256 = smul.addr %s255, 4
        %s257 = smul.addr %s256, 8
        %s258 = scalar_lea.vmem %s4, %s257
        %p259 = scmp.lt.s32.totalorder %s19, 1
        %s260 = scalar_select %p259, %s19, 1
        %s261 = smul.addr %s260, 2
        %s262 = scalar_lea.vmem %s5, %s261
        %v263 = vld [vmem:[%s253] sm:$0xff]
        %v264 = vld [vmem:[%s253 + $0x8] sm:$0xff]
        %v265 = vld [vmem:[%s253 + $0x10] sm:$0xff]
        %v266 = vld [vmem:[%s253 + $0x18] sm:$0xff]
        %271 = vrot.lane.b32.xlu0 %v263, 4
        %v272 = vpop.permute.xlu0 %271
        %273 = vrot.lane.b32.xlu0 %v264, 4
        %v274 = vpop.permute.xlu0 %273
        %275 = vrot.lane.b32.xlu0 %v265, 4
        %v276 = vpop.permute.xlu0 %275
        %277 = vrot.lane.b32.xlu0 %v266, 4
        %v278 = vpop.permute.xlu0 %277
        %vm283 = vcmask 31744
        %v284 = vsel %vm283, 0.0, %v272
        %v285 = vsel %vm283, 0.0, %v274
        %v286 = vsel %vm283, 0.0, %v276
        %v287 = vsel %vm283, 0.0, %v278
        %vm288 = vcmask 293888
        %v289 = vsel %vm288, %v284, 0.0
        %v290 = vsel %vm288, %v285, 0.0
        %v291 = vsel %vm288, %v286, 0.0
        %v292 = vsel %vm288, %v287, 0.0
        %v297 = vrot.slane %v289, 7
        %v298 = vrot.slane %v290, 7
        %v299 = vrot.slane %v291, 7
        %v300 = vrot.slane %v292, 7
        %vm305 = vcmask 1040384
        %v306 = vsel %vm305, 0.0, %v297
        %v307 = vsel %vm305, 0.0, %v298
        %v308 = vsel %vm305, 0.0, %v299
        %v309 = vsel %vm305, 0.0, %v300
        %v310 = vsel %vm305, %v297, 0.0
        %v311 = vsel %vm305, %v298, 0.0
        %v312 = vsel %vm305, %v299, 0.0
        %v313 = vsel %vm305, %v300, 0.0
        %vm314 = vcmask 326656
        %315 = vst.msk [vmem:[#allocation2] sm:$0xff] %vm314, 0.0
        %vm316 = vcmask 320512
        %317 = vst.msk [vmem:[#allocation2 + $0x8] sm:$0x3] %vm316, 0.0
        %s318 = scalar_lea.vmem [#allocation2], 80
        %319 = vst.msk [vmem:[%s318] sm:$0xff] %vm314, 0.0
        %320 = vst.msk [vmem:[%s318 + $0x8] sm:$0x3] %vm316, 0.0
        %s321 = scalar_lea.vmem [#allocation2], 16
        %322 = vst.msk [vmem:[%s321] sm:$0xff] %vm314, %v306
        %323 = vst.msk [vmem:[%s321 + $0x8] sm:$0x3] %vm316, %v310
        %324 = vst.msk [vmem:[%s321 + $0x10] sm:$0xff] %vm314, %v307
        %325 = vst.msk [vmem:[%s321 + $0x18] sm:$0x3] %vm316, %v311
        %326 = vst.msk [vmem:[%s321 + $0x20] sm:$0xff] %vm314, %v308
        %327 = vst.msk [vmem:[%s321 + $0x28] sm:$0x3] %vm316, %v312
        %328 = vst.msk [vmem:[%s321 + $0x30] sm:$0xff] %vm314, %v309
        %329 = vst.msk [vmem:[%s321 + $0x38] sm:$0x3] %vm316, %v313
        %v330 = vld [vmem:[#allocation2] sm:$0xff]
        %v331 = vld [vmem:[#allocation2 + $0x10] sm:$0xff]
        %v332 = vld [vmem:[#allocation2 + $0x20] sm:$0xff]
        %v333 = vld [vmem:[#allocation2 + $0x30] sm:$0xff]
        %v334 = vld [vmem:[#allocation2 + $0x1] sm:$0xff]
        %v335 = vld [vmem:[#allocation2 + $0x11] sm:$0xff]
        %v336 = vld [vmem:[#allocation2 + $0x21] sm:$0xff]
        %v337 = vld [vmem:[#allocation2 + $0x31] sm:$0xff]
        %v338 = vld [vmem:[#allocation2 + $0x2] sm:$0xff]
        %v339 = vld [vmem:[#allocation2 + $0x12] sm:$0xff]
        %v340 = vld [vmem:[#allocation2 + $0x22] sm:$0xff]
        %v341 = vld [vmem:[#allocation2 + $0x32] sm:$0xff]
        %v342 = vld [vmem:[%s321] sm:$0xff]
        %v343 = vld [vmem:[%s321 + $0x10] sm:$0xff]
        %v344 = vld [vmem:[%s321 + $0x20] sm:$0xff]
        %v345 = vld [vmem:[%s321 + $0x30] sm:$0xff]
        %v346 = vld [vmem:[%s321 + $0x1] sm:$0xff]
        %v347 = vld [vmem:[%s321 + $0x11] sm:$0xff]
        %v348 = vld [vmem:[%s321 + $0x21] sm:$0xff]
        %v349 = vld [vmem:[%s321 + $0x31] sm:$0xff]
        %v350 = vld [vmem:[%s321 + $0x2] sm:$0xff]
        %v351 = vld [vmem:[%s321 + $0x12] sm:$0xff]
        %v352 = vld [vmem:[%s321 + $0x22] sm:$0xff]
        %v353 = vld [vmem:[%s321 + $0x32] sm:$0xff]
        %s354 = scalar_lea.vmem [#allocation2], 32
        %v355 = vld [vmem:[%s354] sm:$0xff]
        %v356 = vld [vmem:[%s354 + $0x10] sm:$0xff]
        %v357 = vld [vmem:[%s354 + $0x20] sm:$0xff]
        %v358 = vld [vmem:[%s354 + $0x30] sm:$0xff]
        %v359 = vld [vmem:[%s354 + $0x1] sm:$0xff]
        %v360 = vld [vmem:[%s354 + $0x11] sm:$0xff]
        %v361 = vld [vmem:[%s354 + $0x21] sm:$0xff]
        %v362 = vld [vmem:[%s354 + $0x31] sm:$0xff]
        %v363 = vld [vmem:[%s354 + $0x2] sm:$0xff]
        %v364 = vld [vmem:[%s354 + $0x12] sm:$0xff]
        %v365 = vld [vmem:[%s354 + $0x22] sm:$0xff]
        %v366 = vld [vmem:[%s354 + $0x32] sm:$0xff]
        %371 = vrot.lane.b32.xlu0 %v334, 40
        %v372 = vpop.permute.xlu0 %371
        %373 = vrot.lane.b32.xlu0 %v335, 40
        %v374 = vpop.permute.xlu0 %373
        %375 = vrot.lane.b32.xlu0 %v336, 40
        %v376 = vpop.permute.xlu0 %375
        %377 = vrot.lane.b32.xlu0 %v337, 40
        %v378 = vpop.permute.xlu0 %377
        %387 = vrot.lane.b32.xlu0 %v338, 80
        %v388 = vpop.permute.xlu0 %387
        %389 = vrot.lane.b32.xlu0 %v339, 80
        %v390 = vpop.permute.xlu0 %389
        %391 = vrot.lane.b32.xlu0 %v340, 80
        %v392 = vpop.permute.xlu0 %391
        %393 = vrot.lane.b32.xlu0 %v341, 80
        %v394 = vpop.permute.xlu0 %393
        %403 = vrot.lane.b32.xlu0 %v342, 120
        %v404 = vpop.permute.xlu0 %403
        %405 = vrot.lane.b32.xlu0 %v343, 120
        %v406 = vpop.permute.xlu0 %405
        %407 = vrot.lane.b32.xlu0 %v344, 120
        %v408 = vpop.permute.xlu0 %407
        %409 = vrot.lane.b32.xlu0 %v345, 120
        %v410 = vpop.permute.xlu0 %409
        %419 = vrot.lane.b32.xlu0 %v346, 32
        %v420 = vpop.permute.xlu0 %419
        %421 = vrot.lane.b32.xlu0 %v347, 32
        %v422 = vpop.permute.xlu0 %421
        %423 = vrot.lane.b32.xlu0 %v348, 32
        %v424 = vpop.permute.xlu0 %423
        %425 = vrot.lane.b32.xlu0 %v349, 32
        %v426 = vpop.permute.xlu0 %425
        %435 = vrot.lane.b32.xlu0 %v350, 72
        %v436 = vpop.permute.xlu0 %435
        %437 = vrot.lane.b32.xlu0 %v351, 72
        %v438 = vpop.permute.xlu0 %437
        %439 = vrot.lane.b32.xlu0 %v352, 72
        %v440 = vpop.permute.xlu0 %439
        %441 = vrot.lane.b32.xlu0 %v353, 72
        %v442 = vpop.permute.xlu0 %441
        %451 = vrot.lane.b32.xlu0 %v355, 112
        %v452 = vpop.permute.xlu0 %451
        %453 = vrot.lane.b32.xlu0 %v356, 112
        %v454 = vpop.permute.xlu0 %453
        %455 = vrot.lane.b32.xlu0 %v357, 112
        %v456 = vpop.permute.xlu0 %455
        %457 = vrot.lane.b32.xlu0 %v358, 112
        %v458 = vpop.permute.xlu0 %457
        %467 = vrot.lane.b32.xlu0 %v359, 24
        %v468 = vpop.permute.xlu0 %467
        %469 = vrot.lane.b32.xlu0 %v360, 24
        %v470 = vpop.permute.xlu0 %469
        %471 = vrot.lane.b32.xlu0 %v361, 24
        %v472 = vpop.permute.xlu0 %471
        %473 = vrot.lane.b32.xlu0 %v362, 24
        %v474 = vpop.permute.xlu0 %473
        %483 = vrot.lane.b32.xlu0 %v363, 64
        %v484 = vpop.permute.xlu0 %483
        %485 = vrot.lane.b32.xlu0 %v364, 64
        %v486 = vpop.permute.xlu0 %485
        %487 = vrot.lane.b32.xlu0 %v365, 64
        %v488 = vpop.permute.xlu0 %487
        %489 = vrot.lane.b32.xlu0 %v366, 64
        %v490 = vpop.permute.xlu0 %489
        %v495 = vsel %vm314, %v330, %v372
        %v496 = vsel %vm314, %v331, %v374
        %v497 = vsel %vm314, %v332, %v376
        %v498 = vsel %vm314, %v333, %v378
        %vm499 = vcmask 654336
        %v500 = vsel %vm499, %v495, %v388
        %v501 = vsel %vm499, %v496, %v390
        %v502 = vsel %vm499, %v497, %v392
        %v503 = vsel %vm499, %v498, %v394
        %vm504 = vcmask 982016
        %v505 = vsel %vm504, %v500, %v404
        %v506 = vsel %vm504, %v501, %v406
        %v507 = vsel %vm504, %v502, %v408
        %v508 = vsel %vm504, %v503, %v410
        %vm509 = vcmask 261120
        %v510 = vsel %vm509, %v404, %v420
        %v511 = vsel %vm509, %v406, %v422
        %v512 = vsel %vm509, %v408, %v424
        %v513 = vsel %vm509, %v410, %v426
        %vm514 = vcmask 588800
        %v515 = vsel %vm514, %v510, %v436
        %v516 = vsel %vm514, %v511, %v438
        %v517 = vsel %vm514, %v512, %v440
        %v518 = vsel %vm514, %v513, %v442
        %vm519 = vcmask 916480
        %v520 = vsel %vm519, %v515, %v452
        %v521 = vsel %vm519, %v516, %v454
        %v522 = vsel %vm519, %v517, %v456
        %v523 = vsel %vm519, %v518, %v458
        %vm524 = vcmask 195584
        %v525 = vsel %vm524, %v452, %v468
        %v526 = vsel %vm524, %v454, %v470
        %v527 = vsel %vm524, %v456, %v472
        %v528 = vsel %vm524, %v458, %v474
        %vm529 = vcmask 523264
        %v530 = vsel %vm529, %v525, %v484
        %v531 = vsel %vm529, %v526, %v486
        %v532 = vsel %vm529, %v527, %v488
        %v533 = vsel %vm529, %v528, %v490
        %vm534 = vcmask 850944
        %v535 = vsel %vm534, %v530, 0.0
        %v536 = vsel %vm534, %v531, 0.0
        %v537 = vsel %vm534, %v532, 0.0
        %v538 = vsel %vm534, %v533, 0.0
        %v539 = vld [vmem:[%s1] sm:$0xff]
        %v540 = vld [vmem:[%s1 + $0x8] sm:$0xff]
        %v541 = vld [vmem:[%s1 + $0x10] sm:$0xff]
        %v542 = vld [vmem:[%s1 + $0x18] sm:$0xff]
        %v543 = vld [vmem:[%s1 + $0x20] sm:$0xff]
        %v544 = vld [vmem:[%s1 + $0x28] sm:$0xff]
        %v545 = vld [vmem:[%s1 + $0x30] sm:$0xff]
        %v546 = vld [vmem:[%s1 + $0x38] sm:$0xff]
        %v547 = vld [vmem:[%s1 + $0x40] sm:$0xff]
        %v548 = vld [vmem:[%s1 + $0x48] sm:$0xff]
        %v549 = vld [vmem:[%s1 + $0x50] sm:$0xff]
        %v550 = vld [vmem:[%s1 + $0x58] sm:$0xff]
        %v551 = vld [vmem:[%s1 + $0x60] sm:$0xff]
        %v552 = vld [vmem:[%s1 + $0x68] sm:$0xff]
        %v553 = vld [vmem:[%s1 + $0x70] sm:$0xff]
        %v554 = vld [vmem:[%s1 + $0x78] sm:$0xff]
        %v555 = vld [vmem:[%s1 + $0x80] sm:$0xff]
        %v556 = vld [vmem:[%s1 + $0x88] sm:$0xff]
        %v557 = vld [vmem:[%s1 + $0x90] sm:$0xff]
        %v558 = vld [vmem:[%s1 + $0x98] sm:$0xff]
        %v559 = vld [vmem:[%s1 + $0xa0] sm:$0xff]
        %v560 = vld [vmem:[%s1 + $0xa8] sm:$0xff]
        %v561 = vld [vmem:[%s1 + $0xb0] sm:$0xff]
        %v562 = vld [vmem:[%s1 + $0xb8] sm:$0xff]
        %v563 = vld [vmem:[%s1 + $0xc0] sm:$0xff]
        %v564 = vld [vmem:[%s1 + $0xc8] sm:$0xff]
        %v565 = vld [vmem:[%s1 + $0xd0] sm:$0xff]
        %v566 = vld [vmem:[%s1 + $0xd8] sm:$0xff]
        %v567 = vld [vmem:[%s1 + $0xe0] sm:$0xff]
        %v568 = vld [vmem:[%s1 + $0xe8] sm:$0xff]
        %v569 = vld [vmem:[%s1 + $0xf0] sm:$0xff]
        %v570 = vld [vmem:[%s1 + $0xf8] sm:$0xff]
        %v571 = vld [vmem:[%s1 + $0x100] sm:$0xff]
        %v572 = vld [vmem:[%s1 + $0x108] sm:$0xff]
        %v573 = vld [vmem:[%s1 + $0x110] sm:$0xff]
        %v574 = vld [vmem:[%s1 + $0x118] sm:$0xff]
        %v575 = vld [vmem:[%s1 + $0x120] sm:$0xff]
        %v576 = vld [vmem:[%s1 + $0x128] sm:$0xff]
        %v577 = vld [vmem:[%s1 + $0x130] sm:$0xff]
        %v578 = vld [vmem:[%s1 + $0x138] sm:$0xff]
        %v579 = vld [vmem:[%s1 + $0x140] sm:$0xff]
        %v580 = vld [vmem:[%s1 + $0x148] sm:$0xff]
        %v581 = vld [vmem:[%s1 + $0x150] sm:$0xff]
        %v582 = vld [vmem:[%s1 + $0x158] sm:$0xff]
        %v583 = vld [vmem:[%s1 + $0x160] sm:$0xff]
        %v584 = vld [vmem:[%s1 + $0x168] sm:$0xff]
        %v585 = vld [vmem:[%s1 + $0x170] sm:$0xff]
        %v586 = vld [vmem:[%s1 + $0x178] sm:$0xff]
        %587 = vmatprep.subr.mxu0 0.0
        %588 = vmatpush1.msra.mxu0 %v554
        %589 = vmatprep.subr.mxu0 0.0
        %590 = vmatpush1.msra.mxu0 %v553
        %591 = vmatprep.subr.mxu0 0.0
        %592 = vmatpush1.msra.mxu0 %v552
        %593 = vmatprep.subr.mxu0 0.0
        %594 = vmatpush1.msra.mxu0 %v551
        %595 = vmatprep.subr.mxu0 0.0
        %596 = vmatpush1.msra.mxu0 %v550
        %597 = vmatprep.subr.mxu0 0.0
        %598 = vmatpush1.msra.mxu0 %v549
        %599 = vmatprep.subr.mxu0 0.0
        %600 = vmatpush1.msra.mxu0 %v548
        %601 = vmatprep.subr.mxu0 0.0
        %602 = vmatpush1.msra.mxu0 %v547
        %603 = vmatprep.subr.mxu0 0.0
        %604 = vmatpush1.msra.mxu0 %v546
        %605 = vmatprep.subr.mxu0 0.0
        %606 = vmatpush1.msra.mxu0 %v545
        %607 = vmatprep.subr.mxu0 0.0
        %608 = vmatpush1.msra.mxu0 %v544
        %609 = vmatprep.subr.mxu0 0.0
        %610 = vmatpush1.msra.mxu0 %v543
        %611 = vmatprep.subr.mxu0 0.0
        %612 = vmatpush1.msra.mxu0 %v542
        %613 = vmatprep.subr.mxu0 0.0
        %614 = vmatpush1.msra.mxu0 %v541
        %615 = vmatprep.subr.mxu0 0.0
        %616 = vmatpush1.msra.mxu0 %v540
        %617 = vmatprep.subr.mxu0 0.0
        %618 = vmatpush1.msra.mxu0 %v539
        %619 = vmatprep.subr.mxu0 0.0
        %620 = vmatpush2.msra.mxu0 %v570
        %621 = vmatprep.subr.mxu0 0.0
        %622 = vmatpush2.msra.mxu0 %v569
        %623 = vmatprep.subr.mxu0 0.0
        %624 = vmatpush2.msra.mxu0 %v568
        %625 = vmatprep.subr.mxu0 0.0
        %626 = vmatpush2.msra.mxu0 %v567
        %627 = vmatprep.subr.mxu0 0.0
        %628 = vmatpush2.msra.mxu0 %v566
        %629 = vmatprep.subr.mxu0 0.0
        %630 = vmatpush2.msra.mxu0 %v565
        %631 = vmatprep.subr.mxu0 0.0
        %632 = vmatpush2.msra.mxu0 %v564
        %633 = vmatprep.subr.mxu0 0.0
        %634 = vmatpush2.msra.mxu0 %v563
        %635 = vmatprep.subr.mxu0 0.0
        %636 = vmatpush2.msra.mxu0 %v562
        %637 = vmatprep.subr.mxu0 0.0
        %638 = vmatpush2.msra.mxu0 %v561
        %639 = vmatprep.subr.mxu0 0.0
        %640 = vmatpush2.msra.mxu0 %v560
        %641 = vmatprep.subr.mxu0 0.0
        %642 = vmatpush2.msra.mxu0 %v559
        %643 = vmatprep.subr.mxu0 0.0
        %644 = vmatpush2.msra.mxu0 %v558
        %645 = vmatprep.subr.mxu0 0.0
        %646 = vmatpush2.msra.mxu0 %v557
        %647 = vmatprep.subr.mxu0 0.0
        %648 = vmatpush2.msra.mxu0 %v556
        %649 = vmatprep.subr.mxu0 0.0
        %650 = vmatpush2.msra.mxu0 %v555
        %651 = vmatprep.mubr.f32.mxu0 %v520
        %652 = vmatmul.mubr.f32.gmra.mxu0 %v505
        %v653 = vpop.f32.mrf.mxu0
        %v654 = vadd.f32 0.0, %v653
        %v655 = vpop.f32.mrf.mxu0
        %656 = vmatprep.mubr.f32.mxu0 %v521
        %657 = vmatmul.mubr.f32.gmra.mxu0 %v506
        %v658 = vpop.f32.mrf.mxu0
        %v659 = vadd.f32 0.0, %v658
        %v660 = vpop.f32.mrf.mxu0
        %661 = vmatprep.mubr.f32.mxu0 %v522
        %662 = vmatmul.mubr.f32.gmra.mxu0 %v507
        %v663 = vpop.f32.mrf.mxu0
        %v664 = vadd.f32 0.0, %v663
        %v665 = vpop.f32.mrf.mxu0
        %666 = vmatprep.mubr.f32.mxu0 %v523
        %667 = vmatmul.mubr.f32.gmra.mxu0 %v508
        %v668 = vpop.f32.mrf.mxu0
        %v669 = vadd.f32 0.0, %v668
        %v670 = vpop.f32.mrf.mxu0
        %671 = vdwg.mxu0
        %672 = vmatprep.subr.mxu0 0.0
        %673 = vmatpush1.msra.mxu0 %v586
        %674 = vmatprep.subr.mxu0 0.0
        %675 = vmatpush1.msra.mxu0 %v585
        %676 = vmatprep.subr.mxu0 0.0
        %677 = vmatpush1.msra.mxu0 %v584
        %678 = vmatprep.subr.mxu0 0.0
        %679 = vmatpush1.msra.mxu0 %v583
        %680 = vmatprep.subr.mxu0 0.0
        %681 = vmatpush1.msra.mxu0 %v582
        %682 = vmatprep.subr.mxu0 0.0
        %683 = vmatpush1.msra.mxu0 %v581
        %684 = vmatprep.subr.mxu0 0.0
        %685 = vmatpush1.msra.mxu0 %v580
        %686 = vmatprep.subr.mxu0 0.0
        %687 = vmatpush1.msra.mxu0 %v579
        %688 = vmatprep.subr.mxu0 0.0
        %689 = vmatpush1.msra.mxu0 %v578
        %690 = vmatprep.subr.mxu0 0.0
        %691 = vmatpush1.msra.mxu0 %v577
        %692 = vmatprep.subr.mxu0 0.0
        %693 = vmatpush1.msra.mxu0 %v576
        %694 = vmatprep.subr.mxu0 0.0
        %695 = vmatpush1.msra.mxu0 %v575
        %696 = vmatprep.subr.mxu0 0.0
        %697 = vmatpush1.msra.mxu0 %v574
        %698 = vmatprep.subr.mxu0 0.0
        %699 = vmatpush1.msra.mxu0 %v573
        %700 = vmatprep.subr.mxu0 0.0
        %701 = vmatpush1.msra.mxu0 %v572
        %702 = vmatprep.subr.mxu0 0.0
        %703 = vmatpush1.msra.mxu0 %v571
        %704 = vmatprep.subr.mxu0 0.0
        %705 = vmatpush2.msra.mxu0 0.0
        %706 = vmatprep.subr.mxu0 0.0
        %707 = vmatpush2.msra.mxu0 0.0
        %708 = vmatprep.subr.mxu0 0.0
        %709 = vmatpush2.msra.mxu0 0.0
        %710 = vmatprep.subr.mxu0 0.0
        %711 = vmatpush2.msra.mxu0 0.0
        %712 = vmatprep.subr.mxu0 0.0
        %713 = vmatpush2.msra.mxu0 0.0
        %714 = vmatprep.subr.mxu0 0.0
        %715 = vmatpush2.msra.mxu0 0.0
        %716 = vmatprep.subr.mxu0 0.0
        %717 = vmatpush2.msra.mxu0 0.0
        %718 = vmatprep.subr.mxu0 0.0
        %719 = vmatpush2.msra.mxu0 0.0
        %720 = vmatprep.subr.mxu0 0.0
        %721 = vmatpush2.msra.mxu0 0.0
        %722 = vmatprep.subr.mxu0 0.0
        %723 = vmatpush2.msra.mxu0 0.0
        %724 = vmatprep.subr.mxu0 0.0
        %725 = vmatpush2.msra.mxu0 0.0
        %726 = vmatprep.subr.mxu0 0.0
        %727 = vmatpush2.msra.mxu0 0.0
        %728 = vmatprep.subr.mxu0 0.0
        %729 = vmatpush2.msra.mxu0 0.0
        %730 = vmatprep.subr.mxu0 0.0
        %731 = vmatpush2.msra.mxu0 0.0
        %732 = vmatprep.subr.mxu0 0.0
        %733 = vmatpush2.msra.mxu0 0.0
        %734 = vmatprep.subr.mxu0 0.0
        %735 = vmatpush2.msra.mxu0 0.0
        %736 = vmatprep.mubr.f32.mxu0 0.0
        %737 = vmatmul.mubr.f32.gmra.mxu0 %v535
        %v738 = vpop.f32.mrf.mxu0
        %v739 = vadd.f32 %v654, %v738
        %v740 = vpop.f32.mrf.mxu0
        %741 = vmatprep.mubr.f32.mxu0 0.0
        %742 = vmatmul.mubr.f32.gmra.mxu0 %v536
        %v743 = vpop.f32.mrf.mxu0
        %v744 = vadd.f32 %v659, %v743
        %v745 = vpop.f32.mrf.mxu0
        %746 = vmatprep.mubr.f32.mxu0 0.0
        %747 = vmatmul.mubr.f32.gmra.mxu0 %v537
        %v748 = vpop.f32.mrf.mxu0
        %v749 = vadd.f32 %v664, %v748
        %v750 = vpop.f32.mrf.mxu0
        %751 = vmatprep.mubr.f32.mxu0 0.0
        %752 = vmatmul.mubr.f32.gmra.mxu0 %v538
        %v753 = vpop.f32.mrf.mxu0
        %v754 = vadd.f32 %v669, %v753
        %v755 = vpop.f32.mrf.mxu0
        %756 = vdwg.mxu0
        %757 = vst.msk [vmem:[%s258] sm:$0xff] %vm509, %v739
        %758 = vst.msk [vmem:[%s258 + $0x8] sm:$0xff] %vm509, %v744
        %759 = vst.msk [vmem:[%s258 + $0x10] sm:$0xff] %vm509, %v749
        %760 = vst.msk [vmem:[%s258 + $0x18] sm:$0xff] %vm509, %v754
        %v761 = vsel %vm509, %v739, 0.0
        %v762 = vsel %vm509, %v744, 0.0
        %v763 = vadd.f32 %v761, %v762
        %v764 = vsel %vm509, %v749, 0.0
        %v765 = vadd.f32 %v763, %v764
        %v766 = vsel %vm509, %v754, 0.0
        %v767 = vadd.f32 %v765, %v766
        %v768 = vrot.slane %v767, 4
        %v769 = vadd.f32 %v767, %v768
        %v770 = vrot.slane %v769, 2
        %v771 = vadd.f32 %v769, %v770
        %v772 = vrot.slane %v771, 1
        %v773 = vadd.f32 %v771, %v772
        %v774 = vmul.f32 %v739, %v739
        %v775 = vmul.f32 %v744, %v744
        %v776 = vmul.f32 %v749, %v749
        %v777 = vmul.f32 %v754, %v754
        %v778 = vsel %vm509, %v774, 0.0
        %v779 = vsel %vm509, %v775, 0.0
        %v780 = vadd.f32 %v778, %v779
        %v781 = vsel %vm509, %v776, 0.0
        %v782 = vadd.f32 %v780, %v781
        %v783 = vsel %vm509, %v777, 0.0
        %v784 = vadd.f32 %v782, %v783
        %v785 = vrot.slane %v784, 4
        %v786 = vadd.f32 %v784, %v785
        %v787 = vrot.slane %v786, 2
        %v788 = vadd.f32 %v786, %v787
        %v789 = vrot.slane %v788, 1
        %v790 = vadd.f32 %v788, %v789
        %v791 = vsel %vm305, %v773, %v790
        %vm792 = vcmask 254976
        %793 = vst.msk [vmem:[%s262] sm:$0x3] %vm792, %v791
        %p794 = scmp.lt.s32.totalorder %s19, 1
        %s795 = scalar_select %p794, %s19, 1
        %s796 = smul.addr %s795, 4
        %s797 = smul.addr %s796, 8
        %s798 = scalar_lea.vmem %s4, %s797
        %p799 = scmp.lt.s32.totalorder %s19, 1
        %s800 = scalar_select %p799, %s19, 1
        %s801 = smul.addr %s800, 2
        %s802 = scalar_lea.vmem %s5, %s801
        // Predicated region
        $region45: #{basic_block_3d_forward.3} parent=35 // pred_check
          %p803 = pneg %p126
        $region46: #{basic_block_3d_forward.3} parent=35 // pred_check_branch
          %805 = sbr.rel (%p803) target = $region48
        $region47: #{basic_block_3d_forward.3} parent=35 // pred_region
          _
        $region48: #{basic_block_3d_forward.3} parent=35 // pred_fallthru
          _
        // Predicated region
        $region49: #{basic_block_3d_forward.3} parent=35 // pred_check
          %p806 = pneg %p152
        $region50: #{basic_block_3d_forward.3} parent=35 // pred_check_branch
          %808 = sbr.rel (%p806) target = $region52
        $region51: #{basic_block_3d_forward.3} parent=35 // pred_region
          _
        $region52: #{basic_block_3d_forward.3} parent=35 // pred_fallthru
          _
      $region36: #{basic_block_3d_forward.3} parent=5 // pred_fallthru
        _
      %p809 = scmp.le.s32.totalorder 2, %s14
      // Predicated region
      $region53: #{basic_block_3d_forward.3} parent=5 // pred_check
        %p810 = pneg %p809
      $region54: #{basic_block_3d_forward.3} parent=5 // pred_check_branch
        %812 = sbr.rel (%p810) target = $region56
      $region55: #{basic_block_3d_forward.3} parent=5 // pred_region
        %s813 = ssub.s32 %s14, 2
        // Predicated region
        $region57: #{basic_block_3d_forward.3} parent=55 // pred_check
          %p814 = pneg %p132
        $region58: #{basic_block_3d_forward.3} parent=55 // pred_check_branch
          %816 = sbr.rel (%p814) target = $region60
        $region59: #{basic_block_3d_forward.3} parent=55 // pred_region
          %p817 = scmp.lt.s32.totalorder %s20, 1
          %s818 = scalar_select %p817, %s20, 1
          %s819 = smul.addr %s818, 4
          %s820 = smul.addr %s819, 8
          %s821 = scalar_lea.vmem %s4, %s820
        $region60: #{basic_block_3d_forward.3} parent=55 // pred_fallthru
          _
        // Predicated region
        $region61: #{basic_block_3d_forward.3} parent=55 // pred_check
          %p822 = pneg %p158
        $region62: #{basic_block_3d_forward.3} parent=55 // pred_check_branch
          %824 = sbr.rel (%p822) target = $region64
        $region63: #{basic_block_3d_forward.3} parent=55 // pred_region
          %p825 = scmp.lt.s32.totalorder %s20, 1
          %s826 = scalar_select %p825, %s20, 1
          %s827 = smul.addr %s826, 2
          %s828 = scalar_lea.vmem %s5, %s827
        $region64: #{basic_block_3d_forward.3} parent=55 // pred_fallthru
          _
      $region56: #{basic_block_3d_forward.3} parent=5 // pred_fallthru
        _
    $region6: #{basic_block_3d_forward.3} parent=1 // loop_footer
      %s18 = sadd.s32 1, %s14
    $region7: #{basic_block_3d_forward.3} parent=1 // loop_footer_branch
      %13 = sbr.rel target = $region3
    $region8: #{basic_block_3d_forward.3} parent=1 // loop_exit
      _
    %829 = vsyncpa [#allocation4], 1
    %s830 = scalar_lea.sflag [#allocation4], 1
    %831 = vsyncpa %s830, 1
    %832 = vsyncpa [#allocation6], 1

// kernel: basic_block_3d_forward.4
$region0: #{basic_block_3d_forward.4}
  #allocation0 [shape = 'u32[]', space=smem, size = 0x4, offset = 0x4, fixed_abs, tag = 'smem constant byte address 0x4 - core index']
  #allocation1 [shape = 'u32[144,128]{1,0:T(1,128)}', space=vmem, size = 0x12000, scoped, tag = 'internal scratch']
  #allocation2 [shape = 'f32[6,10,40]{2,1,0:T(8,128)}', space=vmem, size = 0xc000, scoped, tag = 'scratch operand']
  %s0 = inlined_call_operand.vmem [shape: f32[2,4,8,32], index: 0, kind: input, shape index: {}]
  %s1 = inlined_call_operand.vmem [shape: f32[384,32], index: 1, kind: input, shape index: {}]
  %s2 = inlined_call_operand.vmem [shape: f32[4], index: 2, kind: input, shape index: {}]
  %s3 = inlined_call_operand.vmem [shape: f32[4], index: 3, kind: input, shape index: {}]
  %s4 = inlined_call_operand.vmem [shape: f32[2,32,32], index: 4, kind: output, shape index: {0}]
  %s5 = inlined_call_operand.vmem [shape: f32[2,2,32], index: 5, kind: output, shape index: {1}]
  %6 = xla_tuple %s4, %s5
  %s7 = sld [smem:[#allocation0]]
  $region65: #{basic_block_3d_forward.4} parent=0
    _
  %s9 = ssub.s32 1, %s7
  %s10 = scalar_select 0, %s9, %s7
  $region1: #{basic_block_3d_forward.4} parent=0
    #allocation3 [shape = 'u8[512]{0}', space=smem, size = 0x200, scoped, tag = 'input window, operand 2, single buffered']
    #allocation4 [shape = 's32[2]{0}', space=sflag, size = 0x8, scoped, tag = 'scoped memory for basic_block_3d_forward.4']
    #allocation5 [shape = 'u8[512]{0}', space=smem, size = 0x200, scoped, tag = 'input window, operand 3, single buffered']
    #allocation6 [shape = 's32[1]{0}', space=sflag, size = 0x4, scoped, tag = 'scoped memory for basic_block_3d_forward.4']
    %11 = vsyncpa [#allocation4], 0
    %12 = vsyncpa [#allocation6], 0
    loop: start=0, step=1, limit=4
    $region2: #{basic_block_3d_forward.4} parent=1 // loop_pre_header
      _
    $region3: #{basic_block_3d_forward.4} parent=1 // loop_header
      %s14 = sphi 0, %s18
      %p15 = scmp.ge.s32.totalorder %s14, 4
      %s24 = sphi 0, %s26
      %s27 = sphi 0, %s24
      %s28 = sphi 0, %s27
      %s44 = sphi 0, %s28
      %s48 = sphi 0, %s48
      %s50 = sphi 0, %s48
      %s51 = sphi 0, %s50
      %s65 = sphi 0, %s51
      %s69 = sphi 0, %s69
      %s71 = sphi 0, %s69
      %s72 = sphi 0, %s71
      %s86 = sphi 0, %s72
      %s90 = sphi 0, %s90
      %s92 = sphi 0, %s90
      %s93 = sphi 0, %s92
      %s107 = sphi 0, %s93
      %s113 = sphi 0, %s115
      %s116 = sphi 0, %s113
      %s117 = sphi 0, %s116
      %s133 = sphi 0, %s117
      %s139 = sphi 0, %s141
      %s142 = sphi 0, %s139
      %s143 = sphi 0, %s142
      %s159 = sphi 0, %s143
    $region4: #{basic_block_3d_forward.4} parent=1 // loop_header_branch
      %17 = sbr.rel (%p15) target = $region8
    $region5: #{basic_block_3d_forward.4} parent=1 // loop_body
      %s19 = ssub.s32 %s14, 1
      %s20 = ssub.s32 %s14, 2
      %s21 = sadd.s32 %s14, 1
      %s22 = ssub.s32 %s14, %s21
      %p23 = scmp.eq.s32.totalorder %s22, 0
      %s25 = sadd.s32 %s24, 1
      %s26 = scalar_select %p23, %s24, %s25
      %p29 = pneg %p23
      %p30 = scmp.eq.s32.totalorder %s14, 1
      %p31 = por %p29, %p30
      %p32 = scmp.ne.s32.totalorder %s24, %s27
      %p33 = scmp.eq.s32.totalorder %s14, 0
      %p34 = por %p32, %p33
      %p35 = scmp.ne.s32.totalorder %s24, %s27
      %p36 = scmp.eq.s32.totalorder %s19, 1
      %p37 = por %p35, %p36
      %p38 = scmp.ne.s32.totalorder %s27, %s28
      %p39 = scmp.eq.s32.totalorder %s19, 0
      %p40 = por %p38, %p39
      %p41 = scmp.ne.s32.totalorder %s27, %s28
      %p42 = scmp.eq.s32.totalorder %s20, 1
      %p43 = por %p41, %p42
      %p45 = scmp.ne.s32.totalorder %s28, %s44
      %p46 = scmp.eq.s32.totalorder %s20, 0
      %p47 = por %p45, %p46
      %s49 = sadd.s32 %s48, 1
      %p52 = scmp.eq.s32.totalorder %s14, 1
      %p53 = scmp.ne.s32.totalorder %s48, %s50
      %p54 = scmp.eq.s32.totalorder %s14, 0
      %p55 = por %p53, %p54
      %p56 = scmp.ne.s32.totalorder %s48, %s50
      %p57 = scmp.eq.s32.totalorder %s19, 1
      %p58 = por %p56, %p57
      %p59 = scmp.ne.s32.totalorder %s50, %s51
      %p60 = scmp.eq.s32.totalorder %s19, 0
      %p61 = por %p59, %p60
      %p62 = scmp.ne.s32.totalorder %s50, %s51
      %p63 = scmp.eq.s32.totalorder %s20, 1
      %p64 = por %p62, %p63
      %p66 = scmp.ne.s32.totalorder %s51, %s65
      %p67 = scmp.eq.s32.totalorder %s20, 0
      %p68 = por %p66, %p67
      %s70 = sadd.s32 %s69, 1
      %p73 = scmp.eq.s32.totalorder %s14, 1
      %p74 = scmp.ne.s32.totalorder %s69, %s71
      %p75 = scmp.eq.s32.totalorder %s14, 0
      %p76 = por %p74, %p75
      %p77 = scmp.ne.s32.totalorder %s69, %s71
      %p78 = scmp.eq.s32.totalorder %s19, 1
      %p79 = por %p77, %p78
      %p80 = scmp.ne.s32.totalorder %s71, %s72
      %p81 = scmp.eq.s32.totalorder %s19, 0
      %p82 = por %p80, %p81
      %p83 = scmp.ne.s32.totalorder %s71, %s72
      %p84 = scmp.eq.s32.totalorder %s20, 1
      %p85 = por %p83, %p84
      %p87 = scmp.ne.s32.totalorder %s72, %s86
      %p88 = scmp.eq.s32.totalorder %s20, 0
      %p89 = por %p87, %p88
      %s91 = sadd.s32 %s90, 1
      %p94 = scmp.eq.s32.totalorder %s14, 1
      %p95 = scmp.ne.s32.totalorder %s90, %s92
      %p96 = scmp.eq.s32.totalorder %s14, 0
      %p97 = por %p95, %p96
      %p98 = scmp.ne.s32.totalorder %s90, %s92
      %p99 = scmp.eq.s32.totalorder %s19, 1
      %p100 = por %p98, %p99
      %p101 = scmp.ne.s32.totalorder %s92, %s93
      %p102 = scmp.eq.s32.totalorder %s19, 0
      %p103 = por %p101, %p102
      %p104 = scmp.ne.s32.totalorder %s92, %s93
      %p105 = scmp.eq.s32.totalorder %s20, 1
      %p106 = por %p104, %p105
      %p108 = scmp.ne.s32.totalorder %s93, %s107
      %p109 = scmp.eq.s32.totalorder %s20, 0
      %p110 = por %p108, %p109
      %s111 = ssub.s32 %s14, %s21
      %p112 = scmp.eq.s32.totalorder %s111, 0
      %s114 = sadd.s32 %s113, 1
      %s115 = scalar_select %p112, %s113, %s114
      %p118 = pneg %p112
      %p119 = scmp.eq.s32.totalorder %s14, 1
      %p120 = por %p118, %p119
      %p121 = scmp.ne.s32.totalorder %s113, %s116
      %p122 = scmp.eq.s32.totalorder %s14, 0
      %p123 = por %p121, %p122
      %p124 = scmp.ne.s32.totalorder %s113, %s116
      %p125 = scmp.eq.s32.totalorder %s19, 1
      %p126 = por %p124, %p125
      %p127 = scmp.ne.s32.totalorder %s116, %s117
      %p128 = scmp.eq.s32.totalorder %s19, 0
      %p129 = por %p127, %p128
      %p130 = scmp.ne.s32.totalorder %s116, %s117
      %p131 = scmp.eq.s32.totalorder %s20, 1
      %p132 = por %p130, %p131
      %p134 = scmp.ne.s32.totalorder %s117, %s133
      %p135 = scmp.eq.s32.totalorder %s20, 0
      %p136 = por %p134, %p135
      %s137 = ssub.s32 %s14, %s21
      %p138 = scmp.eq.s32.totalorder %s137, 0
      %s140 = sadd.s32 %s139, 1
      %s141 = scalar_select %p138, %s139, %s140
      %p144 = pneg %p138
      %p145 = scmp.eq.s32.totalorder %s14, 1
      %p146 = por %p144, %p145
      %p147 = scmp.ne.s32.totalorder %s139, %s142
      %p148 = scmp.eq.s32.totalorder %s14, 0
      %p149 = por %p147, %p148
      %p150 = scmp.ne.s32.totalorder %s139, %s142
      %p151 = scmp.eq.s32.totalorder %s19, 1
      %p152 = por %p150, %p151
      %p153 = scmp.ne.s32.totalorder %s142, %s143
      %p154 = scmp.eq.s32.totalorder %s19, 0
      %p155 = por %p153, %p154
      %p156 = scmp.ne.s32.totalorder %s142, %s143
      %p157 = scmp.eq.s32.totalorder %s20, 1
      %p158 = por %p156, %p157
      %p160 = scmp.ne.s32.totalorder %s143, %s159
      %p161 = scmp.eq.s32.totalorder %s20, 0
      %p162 = por %p160, %p161
      %p163 = scmp.le.s32.totalorder 1, %s14
      %p164 = scmp.lt.s32.totalorder %s14, 3
      %p165 = pnand %p163, %p164
      %p166 = pneg %p165
      // Predicated region
      $region9: #{basic_block_3d_forward.4} parent=5 // pred_check
        _
      $region10: #{basic_block_3d_forward.4} parent=5 // pred_check_branch
        %168 = sbr.rel (%p165) target = $region12
      $region11: #{basic_block_3d_forward.4} parent=5 // pred_region
        %s169 = ssub.s32 %s14, 1
        // Predicated region
        $region13: #{basic_block_3d_forward.4} parent=11 // pred_check
          %p170 = pneg %p61
        $region14: #{basic_block_3d_forward.4} parent=11 // pred_check_branch
          %172 = sbr.rel (%p170) target = $region16
        $region15: #{basic_block_3d_forward.4} parent=11 // pred_region
          _
        $region16: #{basic_block_3d_forward.4} parent=11 // pred_fallthru
          _
        // Predicated region
        $region17: #{basic_block_3d_forward.4} parent=11 // pred_check
          %p173 = pneg %p82
        $region18: #{basic_block_3d_forward.4} parent=11 // pred_check_branch
          %175 = sbr.rel (%p173) target = $region20
        $region19: #{basic_block_3d_forward.4} parent=11 // pred_region
          %s177 = ssub.s32 16, 16
          %178 = vsyncadd [#allocation4], %s177
          %s180 = sshll.u32 %s2, 4
          %s181 = int_to_ptr.vmem [resolvable:$true] %s180
          %183 = dma.vmem_to_smem %s181, 16, [#allocation3], [#allocation4]
        $region20: #{basic_block_3d_forward.4} parent=11 // pred_fallthru
          _
        // Predicated region
        $region21: #{basic_block_3d_forward.4} parent=11 // pred_check
          %p184 = pneg %p103
        $region22: #{basic_block_3d_forward.4} parent=11 // pred_check_branch
          %186 = sbr.rel (%p184) target = $region24
        $region23: #{basic_block_3d_forward.4} parent=11 // pred_region
          %s188 = ssub.s32 16, 16
          %189 = vsyncadd [#allocation6], %s188
          %s191 = sshll.u32 %s3, 4
          %s192 = int_to_ptr.vmem [resolvable:$true] %s191
          %194 = dma.vmem_to_smem %s192, 16, [#allocation5], [#allocation6]
        $region24: #{basic_block_3d_forward.4} parent=11 // pred_fallthru
          _
      $region12: #{basic_block_3d_forward.4} parent=5 // pred_fallthru
        _
      %p195 = scmp.lt.s32.totalorder %s14, 2
      // Predicated region
      $region25: #{basic_block_3d_forward.4} parent=5 // pred_check
        %p196 = pneg %p195
      $region26: #{basic_block_3d_forward.4} parent=5 // pred_check_branch
        %198 = sbr.rel (%p196) target = $region28
      $region27: #{basic_block_3d_forward.4} parent=5 // pred_region
        // Predicated region
        $region29: #{basic_block_3d_forward.4} parent=27 // pred_check
          %p199 = pneg %p34
        $region30: #{basic_block_3d_forward.4} parent=27 // pred_check_branch
          %201 = sbr.rel (%p199) target = $region32
        $region31: #{basic_block_3d_forward.4} parent=27 // pred_region
          %p202 = scmp.lt.s32.totalorder %s14, 1
          %s203 = scalar_select %p202, %s14, 1
          %s204 = smul.addr %s203, 4
          %s205 = smul.addr %s204, 8
          %s206 = scalar_lea.vmem %s0, %s205
        $region32: #{basic_block_3d_forward.4} parent=27 // pred_fallthru
          _
      $region28: #{basic_block_3d_forward.4} parent=5 // pred_fallthru
        _
      %p207 = scmp.le.s32.totalorder 1, %s14
      %p208 = scmp.lt.s32.totalorder %s14, 3
      %p209 = pnand %p207, %p208
      %p210 = pneg %p209
      // Predicated region
      $region33: #{basic_block_3d_forward.4} parent=5 // pred_check
        _
      $region34: #{basic_block_3d_forward.4} parent=5 // pred_check_branch
        %212 = sbr.rel (%p209) target = $region36
      $region35: #{basic_block_3d_forward.4} parent=5 // pred_region
        %s213 = ssub.s32 %s14, 1
        // Predicated region
        $region37: #{basic_block_3d_forward.4} parent=35 // pred_check
          %p214 = pneg %p82
        $region38: #{basic_block_3d_forward.4} parent=35 // pred_check_branch
          %216 = sbr.rel (%p214) target = $region40
        $region39: #{basic_block_3d_forward.4} parent=35 // pred_region
          %217 = dma.done [#allocation4], 16
        $region40: #{basic_block_3d_forward.4} parent=35 // pred_fallthru
          _
        // Predicated region
        $region41: #{basic_block_3d_forward.4} parent=35 // pred_check
          %p218 = pneg %p103
        $region42: #{basic_block_3d_forward.4} parent=35 // pred_check_branch
          %220 = sbr.rel (%p218) target = $region44
        $region43: #{basic_block_3d_forward.4} parent=35 // pred_region
          %221 = dma.done [#allocation6], 16
        $region44: #{basic_block_3d_forward.4} parent=35 // pred_fallthru
          _
        %222 = sfence
        %p223 = scmp.lt.s32.totalorder %s19, 1
        %s224 = scalar_select %p223, %s19, 1
        %s225 = smul.addr %s224, 4
        %s226 = smul.addr %s225, 8
        %s227 = scalar_lea.vmem %s0, %s226
        %p228 = pneg %p40
        %p229 = pneg %p37
        %p230 = pneg %p61
        %p231 = pneg %p58
        %p232 = pneg %p82
        %p233 = pneg %p79
        %p234 = pneg %p103
        %p235 = pneg %p100
        %p236 = pneg %p129
        %p237 = pneg %p126
        %p238 = scmp.lt.s32.totalorder %s19, 1
        %s239 = scalar_select %p238, %s19, 1
        %s240 = smul.addr %s239, 4
        %s241 = smul.addr %s240, 8
        %s242 = scalar_lea.vmem %s4, %s241
        %p243 = pneg %p155
        %p244 = pneg %p152
        %p245 = scmp.lt.s32.totalorder %s19, 1
        %s246 = scalar_select %p245, %s19, 1
        %s247 = smul.addr %s246, 2
        %s248 = scalar_lea.vmem %s5, %s247
        %p249 = scmp.lt.s32.totalorder %s19, 1
        %s250 = scalar_select %p249, %s19, 1
        %s251 = smul.addr %s250, 4
        %s252 = smul.addr %s251, 8
        %s253 = scalar_lea.vmem %s0, %s252
        %p254 = scmp.lt.s32.totalorder %s19, 1
        %s255 = scalar_select %p254, %s19, 1
        %s256 = smul.addr %s255, 4
        %s257 = smul.addr %s256, 8
        %s258 = scalar_lea.vmem %s4, %s257
        %p259 = scmp.lt.s32.totalorder %s19, 1
        %s260 = scalar_select %p259, %s19, 1
        %s261 = smul.addr %s260, 2
        %s262 = scalar_lea.vmem %s5, %s261
        %v263 = vld [vmem:[%s253] sm:$0xff]
        %v264 = vld [vmem:[%s253 + $0x8] sm:$0xff]
        %v265 = vld [vmem:[%s253 + $0x10] sm:$0xff]
        %v266 = vld [vmem:[%s253 + $0x18] sm:$0xff]
        %v267 = vlaneseq
        %v268 = vand.u32 %v267, 127
        %vm269 = vcmp.lt.s32.totalorder %v268, 0
        %v270 = vsub.s32 0, %v268
        %v271 = vsel %vm269, %v270, %v268
        %v272 = vshrl.u32 %v271, 2
        %v273 = vand.u32 %v271, 3
        %v274 = vsub.s32 0, %v273
        %v275 = vsel %vm269, %v274, %v273
        %vm276 = vcmp.ne.s32.totalorder %v275, 0
        %vm277 = vcmp.lt.s32.totalorder %v275, 0
        %vm278 = vmand %vm277, %vm276
        %v279 = vadd.s32 %v275, 4
        %v280 = vsel %vm278, %v279, %v275
        %vm281 = vcmp.eq.s32.totalorder %v280, 0
        %s282 = sld [smem:[#allocation3]]
        %v283 = vstv %s282
        %v284 = vsel %vm281, %v283, 0.0
        %s285 = sld [smem:[#allocation5]]
        %v286 = vstv %s285
        %v287 = vsel %vm281, %v286, 0.0
        %vm288 = vcmp.eq.s32.totalorder %v280, 1
        %s289 = sld [smem:[#allocation3 + $0x1]]
        %v290 = vstv %s289
        %v291 = vsel %vm288, %v290, %v284
        %s292 = sld [smem:[#allocation5 + $0x1]]
        %v293 = vstv %s292
        %v294 = vsel %vm288, %v293, %v287
        %vm295 = vcmp.eq.s32.totalorder %v280, 2
        %s296 = sld [smem:[#allocation3 + $0x2]]
        %v297 = vstv %s296
        %v298 = vsel %vm295, %v297, %v291
        %s299 = sld [smem:[#allocation5 + $0x2]]
        %v300 = vstv %s299
        %v301 = vsel %vm295, %v300, %v294
        %vm302 = vcmp.eq.s32.totalorder %v280, 3
        %s303 = sld [smem:[#allocation3 + $0x3]]
        %v304 = vstv %s303
        %v305 = vsel %vm302, %v304, %v298
        %s306 = sld [smem:[#allocation5 + $0x3]]
        %v307 = vstv %s306
        %v308 = vsel %vm302, %v307, %v301
        %v309 = vmul.f32 %v263, %v305
        %v310 = vmul.f32 %v264, %v305
        %v311 = vmul.f32 %v265, %v305
        %v312 = vmul.f32 %v266, %v305
        %v313 = vadd.f32 %v309, %v308
        %v314 = vadd.f32 %v310, %v308
        %v315 = vadd.f32 %v311, %v308
        %v316 = vadd.f32 %v312, %v308
        %v317 = vmax.f32 %v313, 0.0
        %v318 = vmax.f32 %v314, 0.0
        %v319 = vmax.f32 %v315, 0.0
        %v320 = vmax.f32 %v316, 0.0
        %325 = vrot.lane.b32.xlu0 %v317, 4
        %v326 = vpop.permute.xlu0 %325
        %327 = vrot.lane.b32.xlu0 %v318, 4
        %v328 = vpop.permute.xlu0 %327
        %329 = vrot.lane.b32.xlu0 %v319, 4
        %v330 = vpop.permute.xlu0 %329
        %331 = vrot.lane.b32.xlu0 %v320, 4
        %v332 = vpop.permute.xlu0 %331
        %vm337 = vcmask 31744
        %v338 = vsel %vm337, 0.0, %v326
        %v339 = vsel %vm337, 0.0, %v328
        %v340 = vsel %vm337, 0.0, %v330
        %v341 = vsel %vm337, 0.0, %v332
        %vm342 = vcmask 293888
        %v343 = vsel %vm342, %v338, 0.0
        %v344 = vsel %vm342, %v339, 0.0
        %v345 = vsel %vm342, %v340, 0.0
        %v346 = vsel %vm342, %v341, 0.0
        %v351 = vrot.slane %v343, 7
        %v352 = vrot.slane %v344, 7
        %v353 = vrot.slane %v345, 7
        %v354 = vrot.slane %v346, 7
        %vm359 = vcmask 1040384
        %v360 = vsel %vm359, 0.0, %v351
        %v361 = vsel %vm359, 0.0, %v352
        %v362 = vsel %vm359, 0.0, %v353
        %v363 = vsel %vm359, 0.0, %v354
        %v364 = vsel %vm359, %v351, 0.0
        %v365 = vsel %vm359, %v352, 0.0
        %v366 = vsel %vm359, %v353, 0.0
        %v367 = vsel %vm359, %v354, 0.0
        %vm368 = vcmask 326656
        %369 = vst.msk [vmem:[#allocation2] sm:$0xff] %vm368, 0.0
        %vm370 = vcmask 320512
        %371 = vst.msk [vmem:[#allocation2 + $0x8] sm:$0x3] %vm370, 0.0
        %s372 = scalar_lea.vmem [#allocation2], 80
        %373 = vst.msk [vmem:[%s372] sm:$0xff] %vm368, 0.0
        %374 = vst.msk [vmem:[%s372 + $0x8] sm:$0x3] %vm370, 0.0
        %s375 = scalar_lea.vmem [#allocation2], 16
        %376 = vst.msk [vmem:[%s375] sm:$0xff] %vm368, %v360
        %377 = vst.msk [vmem:[%s375 + $0x8] sm:$0x3] %vm370, %v364
        %378 = vst.msk [vmem:[%s375 + $0x10] sm:$0xff] %vm368, %v361
        %379 = vst.msk [vmem:[%s375 + $0x18] sm:$0x3] %vm370, %v365
        %380 = vst.msk [vmem:[%s375 + $0x20] sm:$0xff] %vm368, %v362
        %381 = vst.msk [vmem:[%s375 + $0x28] sm:$0x3] %vm370, %v366
        %382 = vst.msk [vmem:[%s375 + $0x30] sm:$0xff] %vm368, %v363
        %383 = vst.msk [vmem:[%s375 + $0x38] sm:$0x3] %vm370, %v367
        %v384 = vld [vmem:[#allocation2] sm:$0xff]
        %v385 = vld [vmem:[#allocation2 + $0x10] sm:$0xff]
        %v386 = vld [vmem:[#allocation2 + $0x20] sm:$0xff]
        %v387 = vld [vmem:[#allocation2 + $0x30] sm:$0xff]
        %v388 = vld [vmem:[#allocation2 + $0x1] sm:$0xff]
        %v389 = vld [vmem:[#allocation2 + $0x11] sm:$0xff]
        %v390 = vld [vmem:[#allocation2 + $0x21] sm:$0xff]
        %v391 = vld [vmem:[#allocation2 + $0x31] sm:$0xff]
        %v392 = vld [vmem:[#allocation2 + $0x2] sm:$0xff]
        %v393 = vld [vmem:[#allocation2 + $0x12] sm:$0xff]
        %v394 = vld [vmem:[#allocation2 + $0x22] sm:$0xff]
        %v395 = vld [vmem:[#allocation2 + $0x32] sm:$0xff]
        %v396 = vld [vmem:[%s375] sm:$0xff]
        %v397 = vld [vmem:[%s375 + $0x10] sm:$0xff]
        %v398 = vld [vmem:[%s375 + $0x20] sm:$0xff]
        %v399 = vld [vmem:[%s375 + $0x30] sm:$0xff]
        %v400 = vld [vmem:[%s375 + $0x1] sm:$0xff]
        %v401 = vld [vmem:[%s375 + $0x11] sm:$0xff]
        %v402 = vld [vmem:[%s375 + $0x21] sm:$0xff]
        %v403 = vld [vmem:[%s375 + $0x31] sm:$0xff]
        %v404 = vld [vmem:[%s375 + $0x2] sm:$0xff]
        %v405 = vld [vmem:[%s375 + $0x12] sm:$0xff]
        %v406 = vld [vmem:[%s375 + $0x22] sm:$0xff]
        %v407 = vld [vmem:[%s375 + $0x32] sm:$0xff]
        %s408 = scalar_lea.vmem [#allocation2], 32
        %v409 = vld [vmem:[%s408] sm:$0xff]
        %v410 = vld [vmem:[%s408 + $0x10] sm:$0xff]
        %v411 = vld [vmem:[%s408 + $0x20] sm:$0xff]
        %v412 = vld [vmem:[%s408 + $0x30] sm:$0xff]
        %v413 = vld [vmem:[%s408 + $0x1] sm:$0xff]
        %v414 = vld [vmem:[%s408 + $0x11] sm:$0xff]
        %v415 = vld [vmem:[%s408 + $0x21] sm:$0xff]
        %v416 = vld [vmem:[%s408 + $0x31] sm:$0xff]
        %v417 = vld [vmem:[%s408 + $0x2] sm:$0xff]
        %v418 = vld [vmem:[%s408 + $0x12] sm:$0xff]
        %v419 = vld [vmem:[%s408 + $0x22] sm:$0xff]
        %v420 = vld [vmem:[%s408 + $0x32] sm:$0xff]
        %425 = vrot.lane.b32.xlu0 %v388, 40
        %v426 = vpop.permute.xlu0 %425
        %427 = vrot.lane.b32.xlu0 %v389, 40
        %v428 = vpop.permute.xlu0 %427
        %429 = vrot.lane.b32.xlu0 %v390, 40
        %v430 = vpop.permute.xlu0 %429
        %431 = vrot.lane.b32.xlu0 %v391, 40
        %v432 = vpop.permute.xlu0 %431
        %441 = vrot.lane.b32.xlu0 %v392, 80
        %v442 = vpop.permute.xlu0 %441
        %443 = vrot.lane.b32.xlu0 %v393, 80
        %v444 = vpop.permute.xlu0 %443
        %445 = vrot.lane.b32.xlu0 %v394, 80
        %v446 = vpop.permute.xlu0 %445
        %447 = vrot.lane.b32.xlu0 %v395, 80
        %v448 = vpop.permute.xlu0 %447
        %457 = vrot.lane.b32.xlu0 %v396, 120
        %v458 = vpop.permute.xlu0 %457
        %459 = vrot.lane.b32.xlu0 %v397, 120
        %v460 = vpop.permute.xlu0 %459
        %461 = vrot.lane.b32.xlu0 %v398, 120
        %v462 = vpop.permute.xlu0 %461
        %463 = vrot.lane.b32.xlu0 %v399, 120
        %v464 = vpop.permute.xlu0 %463
        %473 = vrot.lane.b32.xlu0 %v400, 32
        %v474 = vpop.permute.xlu0 %473
        %475 = vrot.lane.b32.xlu0 %v401, 32
        %v476 = vpop.permute.xlu0 %475
        %477 = vrot.lane.b32.xlu0 %v402, 32
        %v478 = vpop.permute.xlu0 %477
        %479 = vrot.lane.b32.xlu0 %v403, 32
        %v480 = vpop.permute.xlu0 %479
        %489 = vrot.lane.b32.xlu0 %v404, 72
        %v490 = vpop.permute.xlu0 %489
        %491 = vrot.lane.b32.xlu0 %v405, 72
        %v492 = vpop.permute.xlu0 %491
        %493 = vrot.lane.b32.xlu0 %v406, 72
        %v494 = vpop.permute.xlu0 %493
        %495 = vrot.lane.b32.xlu0 %v407, 72
        %v496 = vpop.permute.xlu0 %495
        %505 = vrot.lane.b32.xlu0 %v409, 112
        %v506 = vpop.permute.xlu0 %505
        %507 = vrot.lane.b32.xlu0 %v410, 112
        %v508 = vpop.permute.xlu0 %507
        %509 = vrot.lane.b32.xlu0 %v411, 112
        %v510 = vpop.permute.xlu0 %509
        %511 = vrot.lane.b32.xlu0 %v412, 112
        %v512 = vpop.permute.xlu0 %511
        %521 = vrot.lane.b32.xlu0 %v413, 24
        %v522 = vpop.permute.xlu0 %521
        %523 = vrot.lane.b32.xlu0 %v414, 24
        %v524 = vpop.permute.xlu0 %523
        %525 = vrot.lane.b32.xlu0 %v415, 24
        %v526 = vpop.permute.xlu0 %525
        %527 = vrot.lane.b32.xlu0 %v416, 24
        %v528 = vpop.permute.xlu0 %527
        %537 = vrot.lane.b32.xlu0 %v417, 64
        %v538 = vpop.permute.xlu0 %537
        %539 = vrot.lane.b32.xlu0 %v418, 64
        %v540 = vpop.permute.xlu0 %539
        %541 = vrot.lane.b32.xlu0 %v419, 64
        %v542 = vpop.permute.xlu0 %541
        %543 = vrot.lane.b32.xlu0 %v420, 64
        %v544 = vpop.permute.xlu0 %543
        %v549 = vsel %vm368, %v384, %v426
        %v550 = vsel %vm368, %v385, %v428
        %v551 = vsel %vm368, %v386, %v430
        %v552 = vsel %vm368, %v387, %v432
        %vm553 = vcmask 654336
        %v554 = vsel %vm553, %v549, %v442
        %v555 = vsel %vm553, %v550, %v444
        %v556 = vsel %vm553, %v551, %v446
        %v557 = vsel %vm553, %v552, %v448
        %vm558 = vcmask 982016
        %v559 = vsel %vm558, %v554, %v458
        %v560 = vsel %vm558, %v555, %v460
        %v561 = vsel %vm558, %v556, %v462
        %v562 = vsel %vm558, %v557, %v464
        %vm563 = vcmask 261120
        %v564 = vsel %vm563, %v458, %v474
        %v565 = vsel %vm563, %v460, %v476
        %v566 = vsel %vm563, %v462, %v478
        %v567 = vsel %vm563, %v464, %v480
        %vm568 = vcmask 588800
        %v569 = vsel %vm568, %v564, %v490
        %v570 = vsel %vm568, %v565, %v492
        %v571 = vsel %vm568, %v566, %v494
        %v572 = vsel %vm568, %v567, %v496
        %vm573 = vcmask 916480
        %v574 = vsel %vm573, %v569, %v506
        %v575 = vsel %vm573, %v570, %v508
        %v576 = vsel %vm573, %v571, %v510
        %v577 = vsel %vm573, %v572, %v512
        %vm578 = vcmask 195584
        %v579 = vsel %vm578, %v506, %v522
        %v580 = vsel %vm578, %v508, %v524
        %v581 = vsel %vm578, %v510, %v526
        %v582 = vsel %vm578, %v512, %v528
        %vm583 = vcmask 523264
        %v584 = vsel %vm583, %v579, %v538
        %v585 = vsel %vm583, %v580, %v540
        %v586 = vsel %vm583, %v581, %v542
        %v587 = vsel %vm583, %v582, %v544
        %vm588 = vcmask 850944
        %v589 = vsel %vm588, %v584, 0.0
        %v590 = vsel %vm588, %v585, 0.0
        %v591 = vsel %vm588, %v586, 0.0
        %v592 = vsel %vm588, %v587, 0.0
        %v593 = vld [vmem:[%s1] sm:$0xff]
        %v594 = vld [vmem:[%s1 + $0x8] sm:$0xff]
        %v595 = vld [vmem:[%s1 + $0x10] sm:$0xff]
        %v596 = vld [vmem:[%s1 + $0x18] sm:$0xff]
        %v597 = vld [vmem:[%s1 + $0x20] sm:$0xff]
        %v598 = vld [vmem:[%s1 + $0x28] sm:$0xff]
        %v599 = vld [vmem:[%s1 + $0x30] sm:$0xff]
        %v600 = vld [vmem:[%s1 + $0x38] sm:$0xff]
        %v601 = vld [vmem:[%s1 + $0x40] sm:$0xff]
        %v602 = vld [vmem:[%s1 + $0x48] sm:$0xff]
        %v603 = vld [vmem:[%s1 + $0x50] sm:$0xff]
        %v604 = vld [vmem:[%s1 + $0x58] sm:$0xff]
        %v605 = vld [vmem:[%s1 + $0x60] sm:$0xff]
        %v606 = vld [vmem:[%s1 + $0x68] sm:$0xff]
        %v607 = vld [vmem:[%s1 + $0x70] sm:$0xff]
        %v608 = vld [vmem:[%s1 + $0x78] sm:$0xff]
        %v609 = vld [vmem:[%s1 + $0x80] sm:$0xff]
        %v610 = vld [vmem:[%s1 + $0x88] sm:$0xff]
        %v611 = vld [vmem:[%s1 + $0x90] sm:$0xff]
        %v612 = vld [vmem:[%s1 + $0x98] sm:$0xff]
        %v613 = vld [vmem:[%s1 + $0xa0] sm:$0xff]
        %v614 = vld [vmem:[%s1 + $0xa8] sm:$0xff]
        %v615 = vld [vmem:[%s1 + $0xb0] sm:$0xff]
        %v616 = vld [vmem:[%s1 + $0xb8] sm:$0xff]
        %v617 = vld [vmem:[%s1 + $0xc0] sm:$0xff]
        %v618 = vld [vmem:[%s1 + $0xc8] sm:$0xff]
        %v619 = vld [vmem:[%s1 + $0xd0] sm:$0xff]
        %v620 = vld [vmem:[%s1 + $0xd8] sm:$0xff]
        %v621 = vld [vmem:[%s1 + $0xe0] sm:$0xff]
        %v622 = vld [vmem:[%s1 + $0xe8] sm:$0xff]
        %v623 = vld [vmem:[%s1 + $0xf0] sm:$0xff]
        %v624 = vld [vmem:[%s1 + $0xf8] sm:$0xff]
        %v625 = vld [vmem:[%s1 + $0x100] sm:$0xff]
        %v626 = vld [vmem:[%s1 + $0x108] sm:$0xff]
        %v627 = vld [vmem:[%s1 + $0x110] sm:$0xff]
        %v628 = vld [vmem:[%s1 + $0x118] sm:$0xff]
        %v629 = vld [vmem:[%s1 + $0x120] sm:$0xff]
        %v630 = vld [vmem:[%s1 + $0x128] sm:$0xff]
        %v631 = vld [vmem:[%s1 + $0x130] sm:$0xff]
        %v632 = vld [vmem:[%s1 + $0x138] sm:$0xff]
        %v633 = vld [vmem:[%s1 + $0x140] sm:$0xff]
        %v634 = vld [vmem:[%s1 + $0x148] sm:$0xff]
        %v635 = vld [vmem:[%s1 + $0x150] sm:$0xff]
        %v636 = vld [vmem:[%s1 + $0x158] sm:$0xff]
        %v637 = vld [vmem:[%s1 + $0x160] sm:$0xff]
        %v638 = vld [vmem:[%s1 + $0x168] sm:$0xff]
        %v639 = vld [vmem:[%s1 + $0x170] sm:$0xff]
        %v640 = vld [vmem:[%s1 + $0x178] sm:$0xff]
        %641 = vmatprep.subr.mxu0 0.0
        %642 = vmatpush1.msra.mxu0 %v608
        %643 = vmatprep.subr.mxu0 0.0
        %644 = vmatpush1.msra.mxu0 %v607
        %645 = vmatprep.subr.mxu0 0.0
        %646 = vmatpush1.msra.mxu0 %v606
        %647 = vmatprep.subr.mxu0 0.0
        %648 = vmatpush1.msra.mxu0 %v605
        %649 = vmatprep.subr.mxu0 0.0
        %650 = vmatpush1.msra.mxu0 %v604
        %651 = vmatprep.subr.mxu0 0.0
        %652 = vmatpush1.msra.mxu0 %v603
        %653 = vmatprep.subr.mxu0 0.0
        %654 = vmatpush1.msra.mxu0 %v602
        %655 = vmatprep.subr.mxu0 0.0
        %656 = vmatpush1.msra.mxu0 %v601
        %657 = vmatprep.subr.mxu0 0.0
        %658 = vmatpush1.msra.mxu0 %v600
        %659 = vmatprep.subr.mxu0 0.0
        %660 = vmatpush1.msra.mxu0 %v599
        %661 = vmatprep.subr.mxu0 0.0
        %662 = vmatpush1.msra.mxu0 %v598
        %663 = vmatprep.subr.mxu0 0.0
        %664 = vmatpush1.msra.mxu0 %v597
        %665 = vmatprep.subr.mxu0 0.0
        %666 = vmatpush1.msra.mxu0 %v596
        %667 = vmatprep.subr.mxu0 0.0
        %668 = vmatpush1.msra.mxu0 %v595
        %669 = vmatprep.subr.mxu0 0.0
        %670 = vmatpush1.msra.mxu0 %v594
        %671 = vmatprep.subr.mxu0 0.0
        %672 = vmatpush1.msra.mxu0 %v593
        %673 = vmatprep.subr.mxu0 0.0
        %674 = vmatpush2.msra.mxu0 %v624
        %675 = vmatprep.subr.mxu0 0.0
        %676 = vmatpush2.msra.mxu0 %v623
        %677 = vmatprep.subr.mxu0 0.0
        %678 = vmatpush2.msra.mxu0 %v622
        %679 = vmatprep.subr.mxu0 0.0
        %680 = vmatpush2.msra.mxu0 %v621
        %681 = vmatprep.subr.mxu0 0.0
        %682 = vmatpush2.msra.mxu0 %v620
        %683 = vmatprep.subr.mxu0 0.0
        %684 = vmatpush2.msra.mxu0 %v619
        %685 = vmatprep.subr.mxu0 0.0
        %686 = vmatpush2.msra.mxu0 %v618
        %687 = vmatprep.subr.mxu0 0.0
        %688 = vmatpush2.msra.mxu0 %v617
        %689 = vmatprep.subr.mxu0 0.0
        %690 = vmatpush2.msra.mxu0 %v616
        %691 = vmatprep.subr.mxu0 0.0
        %692 = vmatpush2.msra.mxu0 %v615
        %693 = vmatprep.subr.mxu0 0.0
        %694 = vmatpush2.msra.mxu0 %v614
        %695 = vmatprep.subr.mxu0 0.0
        %696 = vmatpush2.msra.mxu0 %v613
        %697 = vmatprep.subr.mxu0 0.0
        %698 = vmatpush2.msra.mxu0 %v612
        %699 = vmatprep.subr.mxu0 0.0
        %700 = vmatpush2.msra.mxu0 %v611
        %701 = vmatprep.subr.mxu0 0.0
        %702 = vmatpush2.msra.mxu0 %v610
        %703 = vmatprep.subr.mxu0 0.0
        %704 = vmatpush2.msra.mxu0 %v609
        %705 = vmatprep.mubr.f32.mxu0 %v574
        %706 = vmatmul.mubr.f32.gmra.mxu0 %v559
        %v707 = vpop.f32.mrf.mxu0
        %v708 = vadd.f32 0.0, %v707
        %v709 = vpop.f32.mrf.mxu0
        %710 = vmatprep.mubr.f32.mxu0 %v575
        %711 = vmatmul.mubr.f32.gmra.mxu0 %v560
        %v712 = vpop.f32.mrf.mxu0
        %v713 = vadd.f32 0.0, %v712
        %v714 = vpop.f32.mrf.mxu0
        %715 = vmatprep.mubr.f32.mxu0 %v576
        %716 = vmatmul.mubr.f32.gmra.mxu0 %v561
        %v717 = vpop.f32.mrf.mxu0
        %v718 = vadd.f32 0.0, %v717
        %v719 = vpop.f32.mrf.mxu0
        %720 = vmatprep.mubr.f32.mxu0 %v577
        %721 = vmatmul.mubr.f32.gmra.mxu0 %v562
        %v722 = vpop.f32.mrf.mxu0
        %v723 = vadd.f32 0.0, %v722
        %v724 = vpop.f32.mrf.mxu0
        %725 = vdwg.mxu0
        %726 = vmatprep.subr.mxu0 0.0
        %727 = vmatpush1.msra.mxu0 %v640
        %728 = vmatprep.subr.mxu0 0.0
        %729 = vmatpush1.msra.mxu0 %v639
        %730 = vmatprep.subr.mxu0 0.0
        %731 = vmatpush1.msra.mxu0 %v638
        %732 = vmatprep.subr.mxu0 0.0
        %733 = vmatpush1.msra.mxu0 %v637
        %734 = vmatprep.subr.mxu0 0.0
        %735 = vmatpush1.msra.mxu0 %v636
        %736 = vmatprep.subr.mxu0 0.0
        %737 = vmatpush1.msra.mxu0 %v635
        %738 = vmatprep.subr.mxu0 0.0
        %739 = vmatpush1.msra.mxu0 %v634
        %740 = vmatprep.subr.mxu0 0.0
        %741 = vmatpush1.msra.mxu0 %v633
        %742 = vmatprep.subr.mxu0 0.0
        %743 = vmatpush1.msra.mxu0 %v632
        %744 = vmatprep.subr.mxu0 0.0
        %745 = vmatpush1.msra.mxu0 %v631
        %746 = vmatprep.subr.mxu0 0.0
        %747 = vmatpush1.msra.mxu0 %v630
        %748 = vmatprep.subr.mxu0 0.0
        %749 = vmatpush1.msra.mxu0 %v629
        %750 = vmatprep.subr.mxu0 0.0
        %751 = vmatpush1.msra.mxu0 %v628
        %752 = vmatprep.subr.mxu0 0.0
        %753 = vmatpush1.msra.mxu0 %v627
        %754 = vmatprep.subr.mxu0 0.0
        %755 = vmatpush1.msra.mxu0 %v626
        %756 = vmatprep.subr.mxu0 0.0
        %757 = vmatpush1.msra.mxu0 %v625
        %758 = vmatprep.subr.mxu0 0.0
        %759 = vmatpush2.msra.mxu0 0.0
        %760 = vmatprep.subr.mxu0 0.0
        %761 = vmatpush2.msra.mxu0 0.0
        %762 = vmatprep.subr.mxu0 0.0
        %763 = vmatpush2.msra.mxu0 0.0
        %764 = vmatprep.subr.mxu0 0.0
        %765 = vmatpush2.msra.mxu0 0.0
        %766 = vmatprep.subr.mxu0 0.0
        %767 = vmatpush2.msra.mxu0 0.0
        %768 = vmatprep.subr.mxu0 0.0
        %769 = vmatpush2.msra.mxu0 0.0
        %770 = vmatprep.subr.mxu0 0.0
        %771 = vmatpush2.msra.mxu0 0.0
        %772 = vmatprep.subr.mxu0 0.0
        %773 = vmatpush2.msra.mxu0 0.0
        %774 = vmatprep.subr.mxu0 0.0
        %775 = vmatpush2.msra.mxu0 0.0
        %776 = vmatprep.subr.mxu0 0.0
        %777 = vmatpush2.msra.mxu0 0.0
        %778 = vmatprep.subr.mxu0 0.0
        %779 = vmatpush2.msra.mxu0 0.0
        %780 = vmatprep.subr.mxu0 0.0
        %781 = vmatpush2.msra.mxu0 0.0
        %782 = vmatprep.subr.mxu0 0.0
        %783 = vmatpush2.msra.mxu0 0.0
        %784 = vmatprep.subr.mxu0 0.0
        %785 = vmatpush2.msra.mxu0 0.0
        %786 = vmatprep.subr.mxu0 0.0
        %787 = vmatpush2.msra.mxu0 0.0
        %788 = vmatprep.subr.mxu0 0.0
        %789 = vmatpush2.msra.mxu0 0.0
        %790 = vmatprep.mubr.f32.mxu0 0.0
        %791 = vmatmul.mubr.f32.gmra.mxu0 %v589
        %v792 = vpop.f32.mrf.mxu0
        %v793 = vadd.f32 %v708, %v792
        %v794 = vpop.f32.mrf.mxu0
        %795 = vmatprep.mubr.f32.mxu0 0.0
        %796 = vmatmul.mubr.f32.gmra.mxu0 %v590
        %v797 = vpop.f32.mrf.mxu0
        %v798 = vadd.f32 %v713, %v797
        %v799 = vpop.f32.mrf.mxu0
        %800 = vmatprep.mubr.f32.mxu0 0.0
        %801 = vmatmul.mubr.f32.gmra.mxu0 %v591
        %v802 = vpop.f32.mrf.mxu0
        %v803 = vadd.f32 %v718, %v802
        %v804 = vpop.f32.mrf.mxu0
        %805 = vmatprep.mubr.f32.mxu0 0.0
        %806 = vmatmul.mubr.f32.gmra.mxu0 %v592
        %v807 = vpop.f32.mrf.mxu0
        %v808 = vadd.f32 %v723, %v807
        %v809 = vpop.f32.mrf.mxu0
        %810 = vdwg.mxu0
        %811 = vst.msk [vmem:[%s258] sm:$0xff] %vm563, %v793
        %812 = vst.msk [vmem:[%s258 + $0x8] sm:$0xff] %vm563, %v798
        %813 = vst.msk [vmem:[%s258 + $0x10] sm:$0xff] %vm563, %v803
        %814 = vst.msk [vmem:[%s258 + $0x18] sm:$0xff] %vm563, %v808
        %v815 = vsel %vm563, %v793, 0.0
        %v816 = vsel %vm563, %v798, 0.0
        %v817 = vadd.f32 %v815, %v816
        %v818 = vsel %vm563, %v803, 0.0
        %v819 = vadd.f32 %v817, %v818
        %v820 = vsel %vm563, %v808, 0.0
        %v821 = vadd.f32 %v819, %v820
        %v822 = vrot.slane %v821, 4
        %v823 = vadd.f32 %v821, %v822
        %v824 = vrot.slane %v823, 2
        %v825 = vadd.f32 %v823, %v824
        %v826 = vrot.slane %v825, 1
        %v827 = vadd.f32 %v825, %v826
        %v828 = vmul.f32 %v793, %v793
        %v829 = vmul.f32 %v798, %v798
        %v830 = vmul.f32 %v803, %v803
        %v831 = vmul.f32 %v808, %v808
        %v832 = vsel %vm563, %v828, 0.0
        %v833 = vsel %vm563, %v829, 0.0
        %v834 = vadd.f32 %v832, %v833
        %v835 = vsel %vm563, %v830, 0.0
        %v836 = vadd.f32 %v834, %v835
        %v837 = vsel %vm563, %v831, 0.0
        %v838 = vadd.f32 %v836, %v837
        %v839 = vrot.slane %v838, 4
        %v840 = vadd.f32 %v838, %v839
        %v841 = vrot.slane %v840, 2
        %v842 = vadd.f32 %v840, %v841
        %v843 = vrot.slane %v842, 1
        %v844 = vadd.f32 %v842, %v843
        %v845 = vsel %vm359, %v827, %v844
        %vm846 = vcmask 254976
        %847 = vst.msk [vmem:[%s262] sm:$0x3] %vm846, %v845
        %p848 = scmp.lt.s32.totalorder %s19, 1
        %s849 = scalar_select %p848, %s19, 1
        %s850 = smul.addr %s849, 4
        %s851 = smul.addr %s850, 8
        %s852 = scalar_lea.vmem %s4, %s851
        %p853 = scmp.lt.s32.totalorder %s19, 1
        %s854 = scalar_select %p853, %s19, 1
        %s855 = smul.addr %s854, 2
        %s856 = scalar_lea.vmem %s5, %s855
        // Predicated region
        $region45: #{basic_block_3d_forward.4} parent=35 // pred_check
          %p857 = pneg %p126
        $region46: #{basic_block_3d_forward.4} parent=35 // pred_check_branch
          %859 = sbr.rel (%p857) target = $region48
        $region47: #{basic_block_3d_forward.4} parent=35 // pred_region
          _
        $region48: #{basic_block_3d_forward.4} parent=35 // pred_fallthru
          _
        // Predicated region
        $region49: #{basic_block_3d_forward.4} parent=35 // pred_check
          %p860 = pneg %p152
        $region50: #{basic_block_3d_forward.4} parent=35 // pred_check_branch
          %862 = sbr.rel (%p860) target = $region52
        $region51: #{basic_block_3d_forward.4} parent=35 // pred_region
          _
        $region52: #{basic_block_3d_forward.4} parent=35 // pred_fallthru
          _
      $region36: #{basic_block_3d_forward.4} parent=5 // pred_fallthru
        _
      %p863 = scmp.le.s32.totalorder 2, %s14
      // Predicated region
      $region53: #{basic_block_3d_forward.4} parent=5 // pred_check
        %p864 = pneg %p863
      $region54: #{basic_block_3d_forward.4} parent=5 // pred_check_branch
        %866 = sbr.rel (%p864) target = $region56
      $region55: #{basic_block_3d_forward.4} parent=5 // pred_region
        %s867 = ssub.s32 %s14, 2
        // Predicated region
        $region57: #{basic_block_3d_forward.4} parent=55 // pred_check
          %p868 = pneg %p132
        $region58: #{basic_block_3d_forward.4} parent=55 // pred_check_branch
          %870 = sbr.rel (%p868) target = $region60
        $region59: #{basic_block_3d_forward.4} parent=55 // pred_region
          %p871 = scmp.lt.s32.totalorder %s20, 1
          %s872 = scalar_select %p871, %s20, 1
          %s873 = smul.addr %s872, 4
          %s874 = smul.addr %s873, 8
          %s875 = scalar_lea.vmem %s4, %s874
        $region60: #{basic_block_3d_forward.4} parent=55 // pred_fallthru
          _
        // Predicated region
        $region61: #{basic_block_3d_forward.4} parent=55 // pred_check
          %p876 = pneg %p158
        $region62: #{basic_block_3d_forward.4} parent=55 // pred_check_branch
          %878 = sbr.rel (%p876) target = $region64
        $region63: #{basic_block_3d_forward.4} parent=55 // pred_region
          %p879 = scmp.lt.s32.totalorder %s20, 1
          %s880 = scalar_select %p879, %s20, 1
          %s881 = smul.addr %s880, 2
          %s882 = scalar_lea.vmem %s5, %s881
        $region64: #{basic_block_3d_forward.4} parent=55 // pred_fallthru
          _
      $region56: #{basic_block_3d_forward.4} parent=5 // pred_fallthru
        _
    $region6: #{basic_block_3d_forward.4} parent=1 // loop_footer
      %s18 = sadd.s32 1, %s14
    $region7: #{basic_block_3d_forward.4} parent=1 // loop_footer_branch
      %13 = sbr.rel target = $region3
    $region8: #{basic_block_3d_forward.4} parent=1 // loop_exit
      _
    %883 = vsyncpa [#allocation4], 1
    %s884 = scalar_lea.sflag [#allocation4], 1
    %885 = vsyncpa %s884, 1
    %886 = vsyncpa [#allocation6], 1

</llo_original>
